<compile_context>
chip_gen: v6e
topology: v6e:2x2x1
jax: 0.10.0
libtpu: 0.0.40
codegen_flags: <defaults>
</compile_context>

<pallas_src>
import math

import jax
import jax.numpy as jnp
from jax.experimental import pallas as pl
from jax.experimental.pallas import tpu as pltpu

L_IN = 300          # sequence length after x.view(-1, 1, 300)
L_POOL = 150        # MaxPool1d(kernel=3, stride=2, padding=1) output length
BN_EPS = 1e-5


# ---------------------------------------------------------------------------
# Kernel: 5 MXU matmuls + element-wise max / ReLU on a (bt, 300) batch tile.
# ---------------------------------------------------------------------------
def model_kernel(x_ref, wl_ref, wc_ref, wr_ref, bl_ref, bc_ref, br_ref,
                 f1w_ref, f1b_ref, f2w_ref, f2b_ref, out_ref):
    x = x_ref[...]                                    # (bt, 300) f32

    # Folded conv-stack evaluated directly at the three MaxPool window taps.
    al = jnp.dot(x, wl_ref[...], preferred_element_type=jnp.float32) + bl_ref[...]
    ac = jnp.dot(x, wc_ref[...], preferred_element_type=jnp.float32) + bc_ref[...]
    ar = jnp.dot(x, wr_ref[...], preferred_element_type=jnp.float32) + br_ref[...]

    # MaxPool1d(k=3, s=2, p=1): element-wise max of the three taps -> (bt, 150).
    m = jnp.maximum(jnp.maximum(al, ac), ar)

    # Eval-mode BatchNorm is folded into f1w / f1b.  fc1 + ReLU, then fc2.
    h = jnp.dot(m, f1w_ref[...], preferred_element_type=jnp.float32) + f1b_ref[...]
    h = jnp.maximum(h, 0.0)
    o = jnp.dot(h, f2w_ref[...], preferred_element_type=jnp.float32) + f2b_ref[...]
    out_ref[...] = o.astype(out_ref.dtype)


# ---------------------------------------------------------------------------
# Wrapper
# ---------------------------------------------------------------------------
def _cdiv(a, b):
    return -(-a // b)


def _round_up(n, m):
    return _cdiv(n, m) * m


def _choose_bt(batch, max_rows=256):
    # >= 2 tiles whenever possible (v7x megacore balance), minimal padding,
    # sublane-aligned (multiple of 8).
    n_tiles = max(2, _cdiv(batch, max_rows))
    return max(8, _round_up(_cdiv(batch, n_tiles), 8))


def _const_spec(arr):
    return pl.BlockSpec(arr.shape, lambda b, _nd=arr.ndim: (0,) * _nd)


def model_forward(x, params, max_rows=256):
    xr = x.reshape(-1, L_IN).astype(jnp.float32)
    batch = xr.shape[0]
    bt = _choose_bt(batch, max_rows)
    padded = _round_up(batch, bt)
    if padded != batch:
        xr = jnp.pad(xr, ((0, padded - batch), (0, 0)))

    in_specs = [pl.BlockSpec((bt, L_IN), lambda b: (b, 0))]
    in_specs += [_const_spec(p) for p in params]

    out = pl.pallas_call(
        model_kernel,
        out_shape=jax.ShapeDtypeStruct((padded, 5), jnp.float32),
        grid_spec=pltpu.PrefetchScalarGridSpec(
            num_scalar_prefetch=0,
            grid=(padded // bt,),
            in_specs=in_specs,
            out_specs=pl.BlockSpec((bt, 5), lambda b: (b, 0)),
        ),
        compiler_params=pltpu.CompilerParams(
            dimension_semantics=("parallel",),
            vmem_limit_bytes=32 * 1024 * 1024,
        ),
    )(xr, *params)
    return out[:batch]


# ---------------------------------------------------------------------------
# Parameters (PyTorch-default-style init) and packing (operator folding)
# ---------------------------------------------------------------------------
def init_params(key):
    ks = jax.random.split(key, 10)

    def u(k, shape, fan_in):
        bound = 1.0 / math.sqrt(fan_in)
        return jax.random.uniform(k, shape, jnp.float32, -bound, bound)

    return dict(
        conv1_w=u(ks[0], (8, 1, 3), 1 * 3),
        conv1_b=u(ks[1], (8,), 1 * 3),
        pconv_w=u(ks[2], (2, 2, 3), 2 * 3),     # Partial_conv.partial_conv (bias=False)
        cconv_w=u(ks[3], (6, 6, 3), 6 * 3),     # Partial_conv.channel_conv (bias=False)
        conv3_w=u(ks[4], (1, 8, 3), 8 * 3),
        conv3_b=u(ks[5], (1,), 8 * 3),
        fc1_w=u(ks[6], (16, 150), 150),
        fc1_b=u(ks[7], (16,), 150),
        fc2_w=u(ks[8], (5, 16), 16),
        fc2_b=u(ks[9], (5,), 16),
    )


def _conv(a, w, b=None):
    o = jax.lax.conv_general_dilated(a, w, (1,), ((1, 1),),
                                     dimension_numbers=("NCH", "OIH", "NCH"))
    if b is not None:
        o = o + b[None, :, None]
    return o


def _conv_stack(xr, raw):
    """conv1 -> Partial_conv(8,4) -> conv3, on (B, 1, 300) -> (B, 300)."""
    a = _conv(xr, raw["conv1_w"], raw["conv1_b"])
    x1, x2 = a[:, :2], a[:, 2:]
    x1 = _conv(x1, raw["pconv_w"])
    lc = x2.shape[-1] // 4
    x3 = _conv(x2[..., :lc], raw["cconv_w"])
    x2 = jnp.concatenate([x3, x2[..., lc:]], axis=-1)
    a = jnp.concatenate([x1, x2], axis=1)
    a = _conv(a, raw["conv3_w"], raw["conv3_b"])
    return a[:, 0, :]


def pack_params(raw):
    # ---- Exact affine fold of the conv stack: a3 = x @ A + d  (A is banded).
    d = _conv_stack(jnp.zeros((1, 1, L_IN), jnp.float32), raw)[0]          # (300,)
    eye = jnp.eye(L_IN, dtype=jnp.float32)[:, None, :]                     # (300,1,300)
    A = _conv_stack(eye, raw) - d[None, :]                                 # (300,300)

    # ---- Fold MaxPool window taps (2p-1, 2p, 2p+1) and the stride-2 selection.
    big_neg = jnp.finfo(jnp.float32).min
    w_ctr = A[:, 0::2]                                                     # (300,150)
    b_ctr = d[0::2]
    w_right = A[:, 1::2]                                                   # (300,150)
    b_right = d[1::2]
    w_left = jnp.concatenate(
        [jnp.zeros((L_IN, 1), jnp.float32), A[:, 1:L_IN - 2:2]], axis=1)   # (300,150)
    b_left = jnp.concatenate(
        [jnp.array([big_neg], jnp.float32), d[1:L_IN - 2:2]])              # pool pad

    # ---- Eval-mode BatchNorm1d(1) folded into fc1 (defaults: mean=0, var=1,
    # gamma=1, beta=0).  With a trained model plug the real stats in here.
    # TODO(synk): training-mode batch statistics of BatchNorm1d are not reproduced.
    bn_gamma, bn_beta, bn_mean, bn_var = 1.0, 0.0, 0.0, 1.0
    s = bn_gamma / math.sqrt(bn_var + BN_EPS)
    c = bn_beta - bn_mean * s
    f1w = raw["fc1_w"].T * s                                               # (150,16)
    f1b = raw["fc1_b"] + c * raw["fc1_w"].sum(axis=1)                      # (16,)

    return [
        w_left, w_ctr, w_right,
        b_left.reshape(1, L_POOL), b_ctr.reshape(1, L_POOL), b_right.reshape(1, L_POOL),
        f1w, f1b.reshape(1, 16),
        raw["fc2_w"].T, raw["fc2_b"].reshape(1, 5),
    ]


# ---------------------------------------------------------------------------
# Pure-JAX reference mirroring the PyTorch forward (eval-mode BN)
# ---------------------------------------------------------------------------
def ref_forward(x, raw):
    xr = x.reshape(-1, 1, L_IN).astype(jnp.float32)
    a = _conv_stack(xr, raw)[:, None, :]
    a = jax.lax.reduce_window(a, -jnp.inf, jax.lax.max, (1, 1, 3), (1, 1, 2),
                              ((0, 0), (0, 0), (1, 1)))
    a = a / jnp.sqrt(1.0 + BN_EPS)
    a = a.reshape(a.shape[0], -1)
    h = jnp.maximum(a @ raw["fc1_w"].T + raw["fc1_b"], 0.0)
    return h @ raw["fc2_w"].T + raw["fc2_b"]


if __name__ == "__main__":
    key = jax.random.PRNGKey(0)
    k_param, k_x = jax.random.split(key)
    raw = init_params(k_param)
    params = pack_params(raw)

    batch = 20                                     # small: 2 tiles of 16 rows
    x = jax.random.normal(k_x, (batch, L_IN), jnp.float32)

    out = jax.block_until_ready(model_forward(x, params))
    ref = jax.block_until_ready(ref_forward(x, raw))

    assert out.shape == (batch, 5), out.shape
    assert jnp.allclose(out, ref, atol=5e-4, rtol=5e-4), (
        float(jnp.max(jnp.abs(out - ref))))
    print("KERNEL_OK")
</pallas_src>

<mosaic_0001>
module attributes {stable_mosaic.version = 11 : i64} {
  func.func @model_kernel(%arg0: i32, %arg1: memref<16x300xf32, #tpu.memory_space<vmem>>, %arg2: memref<300x150xf32, #tpu.memory_space<vmem>>, %arg3: memref<300x150xf32, #tpu.memory_space<vmem>>, %arg4: memref<300x150xf32, #tpu.memory_space<vmem>>, %arg5: memref<1x150xf32, #tpu.memory_space<vmem>>, %arg6: memref<1x150xf32, #tpu.memory_space<vmem>>, %arg7: memref<1x150xf32, #tpu.memory_space<vmem>>, %arg8: memref<150x16xf32, #tpu.memory_space<vmem>>, %arg9: memref<1x16xf32, #tpu.memory_space<vmem>>, %arg10: memref<16x5xf32, #tpu.memory_space<vmem>>, %arg11: memref<1x5xf32, #tpu.memory_space<vmem>>, %arg12: memref<16x5xf32, #tpu.memory_space<vmem>>) attributes {dimension_semantics = [#tpu.dimension_semantics<parallel>], iteration_bounds = array<i64: 2>, scalar_prefetch = 0 : i64, scratch_operands = 0 : i64, tpu.core_type = #tpu.core_type<tc>, window_params = [{transform_indices = @transform_0, window_bounds = array<i64: 16, 300>}, {pipeline_mode = #tpu.pipeline_mode<synchronous>, transform_indices = @transform_1, window_bounds = array<i64: 300, 150>}, {pipeline_mode = #tpu.pipeline_mode<synchronous>, transform_indices = @transform_2, window_bounds = array<i64: 300, 150>}, {pipeline_mode = #tpu.pipeline_mode<synchronous>, transform_indices = @transform_3, window_bounds = array<i64: 300, 150>}, {pipeline_mode = #tpu.pipeline_mode<synchronous>, transform_indices = @transform_4, window_bounds = array<i64: 1, 150>}, {pipeline_mode = #tpu.pipeline_mode<synchronous>, transform_indices = @transform_5, window_bounds = array<i64: 1, 150>}, {pipeline_mode = #tpu.pipeline_mode<synchronous>, transform_indices = @transform_6, window_bounds = array<i64: 1, 150>}, {pipeline_mode = #tpu.pipeline_mode<synchronous>, transform_indices = @transform_7, window_bounds = array<i64: 150, 16>}, {pipeline_mode = #tpu.pipeline_mode<synchronous>, transform_indices = @transform_8, window_bounds = array<i64: 1, 16>}, {pipeline_mode = #tpu.pipeline_mode<synchronous>, transform_indices = @transform_9, window_bounds = array<i64: 16, 5>}, {pipeline_mode = #tpu.pipeline_mode<synchronous>, transform_indices = @transform_10, window_bounds = array<i64: 1, 5>}, {transform_indices = @transform_11, window_bounds = array<i64: 16, 5>}]} {
    %c0 = arith.constant 0 : index
    %c0_0 = arith.constant 0 : index
    %0 = vector.load %arg1[%c0, %c0_0] : memref<16x300xf32, #tpu.memory_space<vmem>>, vector<16x300xf32>
    %c0_1 = arith.constant 0 : index
    %c0_2 = arith.constant 0 : index
    %1 = vector.load %arg2[%c0_1, %c0_2] : memref<300x150xf32, #tpu.memory_space<vmem>>, vector<300x150xf32>
    %cst = arith.constant dense<0.000000e+00> : vector<16x150xf32>
    %2 = tpu.matmul %0, %1, %cst {dimension_numbers = #tpu.dot_dimension_numbers<[1], [0], [0], [1], [0, 0, 1, 1], [], []>} : vector<16x300xf32>, vector<300x150xf32>, vector<16x150xf32> -> vector<16x150xf32>
    %c0_3 = arith.constant 0 : index
    %c0_4 = arith.constant 0 : index
    %3 = vector.load %arg5[%c0_3, %c0_4] : memref<1x150xf32, #tpu.memory_space<vmem>>, vector<1x150xf32>
    %4 = vector.broadcast %3 : vector<1x150xf32> to vector<16x150xf32>
    %5 = arith.addf %2, %4 : vector<16x150xf32>
    %c0_5 = arith.constant 0 : index
    %c0_6 = arith.constant 0 : index
    %6 = vector.load %arg3[%c0_5, %c0_6] : memref<300x150xf32, #tpu.memory_space<vmem>>, vector<300x150xf32>
    %cst_7 = arith.constant dense<0.000000e+00> : vector<16x150xf32>
    %7 = tpu.matmul %0, %6, %cst_7 {dimension_numbers = #tpu.dot_dimension_numbers<[1], [0], [0], [1], [0, 0, 1, 1], [], []>} : vector<16x300xf32>, vector<300x150xf32>, vector<16x150xf32> -> vector<16x150xf32>
    %c0_8 = arith.constant 0 : index
    %c0_9 = arith.constant 0 : index
    %8 = vector.load %arg6[%c0_8, %c0_9] : memref<1x150xf32, #tpu.memory_space<vmem>>, vector<1x150xf32>
    %9 = vector.broadcast %8 : vector<1x150xf32> to vector<16x150xf32>
    %10 = arith.addf %7, %9 : vector<16x150xf32>
    %c0_10 = arith.constant 0 : index
    %c0_11 = arith.constant 0 : index
    %11 = vector.load %arg4[%c0_10, %c0_11] : memref<300x150xf32, #tpu.memory_space<vmem>>, vector<300x150xf32>
    %cst_12 = arith.constant dense<0.000000e+00> : vector<16x150xf32>
    %12 = tpu.matmul %0, %11, %cst_12 {dimension_numbers = #tpu.dot_dimension_numbers<[1], [0], [0], [1], [0, 0, 1, 1], [], []>} : vector<16x300xf32>, vector<300x150xf32>, vector<16x150xf32> -> vector<16x150xf32>
    %c0_13 = arith.constant 0 : index
    %c0_14 = arith.constant 0 : index
    %13 = vector.load %arg7[%c0_13, %c0_14] : memref<1x150xf32, #tpu.memory_space<vmem>>, vector<1x150xf32>
    %14 = vector.broadcast %13 : vector<1x150xf32> to vector<16x150xf32>
    %15 = arith.addf %12, %14 : vector<16x150xf32>
    %16 = arith.maximumf %5, %10 : vector<16x150xf32>
    %17 = arith.maximumf %16, %15 : vector<16x150xf32>
    %c0_15 = arith.constant 0 : index
    %c0_16 = arith.constant 0 : index
    %18 = vector.load %arg8[%c0_15, %c0_16] : memref<150x16xf32, #tpu.memory_space<vmem>>, vector<150x16xf32>
    %cst_17 = arith.constant dense<0.000000e+00> : vector<16x16xf32>
    %19 = tpu.matmul %17, %18, %cst_17 {dimension_numbers = #tpu.dot_dimension_numbers<[1], [0], [0], [1], [0, 0, 1, 1], [], []>} : vector<16x150xf32>, vector<150x16xf32>, vector<16x16xf32> -> vector<16x16xf32>
    %c0_18 = arith.constant 0 : index
    %c0_19 = arith.constant 0 : index
    %20 = vector.load %arg9[%c0_18, %c0_19] : memref<1x16xf32, #tpu.memory_space<vmem>>, vector<1x16xf32>
    %21 = vector.broadcast %20 : vector<1x16xf32> to vector<16x16xf32>
    %22 = arith.addf %19, %21 : vector<16x16xf32>
    %cst_20 = arith.constant 0.000000e+00 : f32
    %23 = vector.broadcast %cst_20 : f32 to vector<16x16xf32>
    %24 = arith.maximumf %22, %23 : vector<16x16xf32>
    %c0_21 = arith.constant 0 : index
    %c0_22 = arith.constant 0 : index
    %25 = vector.load %arg10[%c0_21, %c0_22] : memref<16x5xf32, #tpu.memory_space<vmem>>, vector<16x5xf32>
    %cst_23 = arith.constant dense<0.000000e+00> : vector<16x5xf32>
    %26 = tpu.matmul %24, %25, %cst_23 {dimension_numbers = #tpu.dot_dimension_numbers<[1], [0], [0], [1], [0, 0, 1, 1], [], []>} : vector<16x16xf32>, vector<16x5xf32>, vector<16x5xf32> -> vector<16x5xf32>
    %c0_24 = arith.constant 0 : index
    %c0_25 = arith.constant 0 : index
    %27 = vector.load %arg11[%c0_24, %c0_25] : memref<1x5xf32, #tpu.memory_space<vmem>>, vector<1x5xf32>
    %28 = vector.broadcast %27 : vector<1x5xf32> to vector<16x5xf32>
    %29 = arith.addf %26, %28 : vector<16x5xf32>
    %c0_26 = arith.constant 0 : index
    %c0_27 = arith.constant 0 : index
    %30 = vector.load %arg12[%c0_26, %c0_27] : memref<16x5xf32, #tpu.memory_space<vmem>>, vector<16x5xf32>
    tpu.vector_store %arg12[%c0_26, %c0_27], %29 {strides = array<i32>} : memref<16x5xf32, #tpu.memory_space<vmem>>, vector<16x5xf32>,
    return
  }
  func.func @transform_0(%arg0: i32) -> (i32, i32) {
    %c0_i32 = arith.constant 0 : i32
    %c0_i32_0 = arith.constant 0 : i32
    return %arg0, %c0_i32 : i32, i32
  }
  func.func @transform_1(%arg0: i32) -> (i32, i32) {
    %c0_i32 = arith.constant 0 : i32
    %c0_i32_0 = arith.constant 0 : i32
    %c0_i32_1 = arith.constant 0 : i32
    return %c0_i32, %c0_i32_0 : i32, i32
  }
  func.func @transform_2(%arg0: i32) -> (i32, i32) {
    %c0_i32 = arith.constant 0 : i32
    %c0_i32_0 = arith.constant 0 : i32
    %c0_i32_1 = arith.constant 0 : i32
    return %c0_i32, %c0_i32_0 : i32, i32
  }
  func.func @transform_3(%arg0: i32) -> (i32, i32) {
    %c0_i32 = arith.constant 0 : i32
    %c0_i32_0 = arith.constant 0 : i32
    %c0_i32_1 = arith.constant 0 : i32
    return %c0_i32, %c0_i32_0 : i32, i32
  }
  func.func @transform_4(%arg0: i32) -> (i32, i32) {
    %c0_i32 = arith.constant 0 : i32
    %c0_i32_0 = arith.constant 0 : i32
    %c0_i32_1 = arith.constant 0 : i32
    return %c0_i32, %c0_i32_0 : i32, i32
  }
  func.func @transform_5(%arg0: i32) -> (i32, i32) {
    %c0_i32 = arith.constant 0 : i32
    %c0_i32_0 = arith.constant 0 : i32
    %c0_i32_1 = arith.constant 0 : i32
    return %c0_i32, %c0_i32_0 : i32, i32
  }
  func.func @transform_6(%arg0: i32) -> (i32, i32) {
    %c0_i32 = arith.constant 0 : i32
    %c0_i32_0 = arith.constant 0 : i32
    %c0_i32_1 = arith.constant 0 : i32
    return %c0_i32, %c0_i32_0 : i32, i32
  }
  func.func @transform_7(%arg0: i32) -> (i32, i32) {
    %c0_i32 = arith.constant 0 : i32
    %c0_i32_0 = arith.constant 0 : i32
    %c0_i32_1 = arith.constant 0 : i32
    return %c0_i32, %c0_i32_0 : i32, i32
  }
  func.func @transform_8(%arg0: i32) -> (i32, i32) {
    %c0_i32 = arith.constant 0 : i32
    %c0_i32_0 = arith.constant 0 : i32
    %c0_i32_1 = arith.constant 0 : i32
    return %c0_i32, %c0_i32_0 : i32, i32
  }
  func.func @transform_9(%arg0: i32) -> (i32, i32) {
    %c0_i32 = arith.constant 0 : i32
    %c0_i32_0 = arith.constant 0 : i32
    %c0_i32_1 = arith.constant 0 : i32
    return %c0_i32, %c0_i32_0 : i32, i32
  }
  func.func @transform_10(%arg0: i32) -> (i32, i32) {
    %c0_i32 = arith.constant 0 : i32
    %c0_i32_0 = arith.constant 0 : i32
    %c0_i32_1 = arith.constant 0 : i32
    return %c0_i32, %c0_i32_0 : i32, i32
  }
  func.func @transform_11(%arg0: i32) -> (i32, i32) {
    %c0_i32 = arith.constant 0 : i32
    %c0_i32_0 = arith.constant 0 : i32
    return %arg0, %c0_i32 : i32, i32
  }
}

</mosaic_0001>

<llo_original>
// kernel: tpu_custom_call.1
$region0: #{tpu_custom_call.1}
  #allocation0 [shape = 'u32[]', space=smem, size = 0x4, offset = 0x4, fixed_abs, tag = 'smem constant byte address 0x4 - core index']
  #allocation1 [shape = 'u32[144,128]{1,0:T(1,128)}', space=vmem, size = 0x12000, scoped, tag = 'internal scratch']
  %s0 = inlined_call_operand.vmem [shape: f32[32,300], index: 0, kind: input, shape index: {}]
  %s1 = inlined_call_operand.vmem [shape: f32[300,150], index: 1, kind: input, shape index: {}]
  %s2 = inlined_call_operand.vmem [shape: f32[300,150], index: 2, kind: input, shape index: {}]
  %s3 = inlined_call_operand.vmem [shape: f32[300,150], index: 3, kind: input, shape index: {}]
  %s4 = inlined_call_operand.vmem [shape: f32[1,150], index: 4, kind: input, shape index: {}]
  %s5 = inlined_call_operand.vmem [shape: f32[1,150], index: 5, kind: input, shape index: {}]
  %s6 = inlined_call_operand.vmem [shape: f32[1,150], index: 6, kind: input, shape index: {}]
  %s7 = inlined_call_operand.vmem [shape: f32[150,16], index: 7, kind: input, shape index: {}]
  %s8 = inlined_call_operand.vmem [shape: f32[1,16], index: 8, kind: input, shape index: {}]
  %s9 = inlined_call_operand.vmem [shape: f32[16,5], index: 9, kind: input, shape index: {}]
  %s10 = inlined_call_operand.vmem [shape: f32[1,5], index: 10, kind: input, shape index: {}]
  %s11 = inlined_call_operand.vmem [shape: f32[32,5], index: 11, kind: output, shape index: {}]
  %s12 = sld [smem:[#allocation0]]
  $region77: #{tpu_custom_call.1} parent=0
    _
  %s14 = ssub.s32 1, %s12
  %s15 = scalar_select 0, %s14, %s12
  loop: start=0, step=1, limit=4
  $region2: #{tpu_custom_call.1} parent=0 // loop_pre_header
    _
  $region3: #{tpu_custom_call.1} parent=0 // loop_header
    %s17 = sphi 0, %s21
    %p18 = scmp.ge.s32.totalorder %s17, 4
    %s27 = sphi 0, %s29
    %s30 = sphi 0, %s27
    %s31 = sphi 0, %s30
    %s47 = sphi 0, %s31
    %s51 = sphi 0, %s51
    %s53 = sphi 0, %s51
    %s54 = sphi 0, %s53
    %s68 = sphi 0, %s54
    %s72 = sphi 0, %s72
    %s74 = sphi 0, %s72
    %s75 = sphi 0, %s74
    %s89 = sphi 0, %s75
    %s93 = sphi 0, %s93
    %s95 = sphi 0, %s93
    %s96 = sphi 0, %s95
    %s110 = sphi 0, %s96
    %s114 = sphi 0, %s114
    %s116 = sphi 0, %s114
    %s117 = sphi 0, %s116
    %s131 = sphi 0, %s117
    %s135 = sphi 0, %s135
    %s137 = sphi 0, %s135
    %s138 = sphi 0, %s137
    %s152 = sphi 0, %s138
    %s156 = sphi 0, %s156
    %s158 = sphi 0, %s156
    %s159 = sphi 0, %s158
    %s173 = sphi 0, %s159
    %s177 = sphi 0, %s177
    %s179 = sphi 0, %s177
    %s180 = sphi 0, %s179
    %s194 = sphi 0, %s180
    %s198 = sphi 0, %s198
    %s200 = sphi 0, %s198
    %s201 = sphi 0, %s200
    %s215 = sphi 0, %s201
    %s219 = sphi 0, %s219
    %s221 = sphi 0, %s219
    %s222 = sphi 0, %s221
    %s236 = sphi 0, %s222
    %s240 = sphi 0, %s240
    %s242 = sphi 0, %s240
    %s243 = sphi 0, %s242
    %s257 = sphi 0, %s243
    %s263 = sphi 0, %s265
    %s266 = sphi 0, %s263
    %s267 = sphi 0, %s266
    %s283 = sphi 0, %s267
  $region4: #{tpu_custom_call.1} parent=0 // loop_header_branch
    %20 = sbr.rel (%p18) target = $region8
  $region5: #{tpu_custom_call.1} parent=0 // loop_body
    %s22 = ssub.s32 %s17, 1
    %s23 = ssub.s32 %s17, 2
    %s24 = sadd.s32 %s17, 1
    %s25 = ssub.s32 %s17, %s24
    %p26 = scmp.eq.s32.totalorder %s25, 0
    %s28 = sadd.s32 %s27, 1
    %s29 = scalar_select %p26, %s27, %s28
    %p32 = pneg %p26
    %p33 = scmp.eq.s32.totalorder %s17, 1
    %p34 = por %p32, %p33
    %p35 = scmp.ne.s32.totalorder %s27, %s30
    %p36 = scmp.eq.s32.totalorder %s17, 0
    %p37 = por %p35, %p36
    %p38 = scmp.ne.s32.totalorder %s27, %s30
    %p39 = scmp.eq.s32.totalorder %s22, 1
    %p40 = por %p38, %p39
    %p41 = scmp.ne.s32.totalorder %s30, %s31
    %p42 = scmp.eq.s32.totalorder %s22, 0
    %p43 = por %p41, %p42
    %p44 = scmp.ne.s32.totalorder %s30, %s31
    %p45 = scmp.eq.s32.totalorder %s23, 1
    %p46 = por %p44, %p45
    %p48 = scmp.ne.s32.totalorder %s31, %s47
    %p49 = scmp.eq.s32.totalorder %s23, 0
    %p50 = por %p48, %p49
    %s52 = sadd.s32 %s51, 1
    %p55 = scmp.eq.s32.totalorder %s17, 1
    %p56 = scmp.ne.s32.totalorder %s51, %s53
    %p57 = scmp.eq.s32.totalorder %s17, 0
    %p58 = por %p56, %p57
    %p59 = scmp.ne.s32.totalorder %s51, %s53
    %p60 = scmp.eq.s32.totalorder %s22, 1
    %p61 = por %p59, %p60
    %p62 = scmp.ne.s32.totalorder %s53, %s54
    %p63 = scmp.eq.s32.totalorder %s22, 0
    %p64 = por %p62, %p63
    %p65 = scmp.ne.s32.totalorder %s53, %s54
    %p66 = scmp.eq.s32.totalorder %s23, 1
    %p67 = por %p65, %p66
    %p69 = scmp.ne.s32.totalorder %s54, %s68
    %p70 = scmp.eq.s32.totalorder %s23, 0
    %p71 = por %p69, %p70
    %s73 = sadd.s32 %s72, 1
    %p76 = scmp.eq.s32.totalorder %s17, 1
    %p77 = scmp.ne.s32.totalorder %s72, %s74
    %p78 = scmp.eq.s32.totalorder %s17, 0
    %p79 = por %p77, %p78
    %p80 = scmp.ne.s32.totalorder %s72, %s74
    %p81 = scmp.eq.s32.totalorder %s22, 1
    %p82 = por %p80, %p81
    %p83 = scmp.ne.s32.totalorder %s74, %s75
    %p84 = scmp.eq.s32.totalorder %s22, 0
    %p85 = por %p83, %p84
    %p86 = scmp.ne.s32.totalorder %s74, %s75
    %p87 = scmp.eq.s32.totalorder %s23, 1
    %p88 = por %p86, %p87
    %p90 = scmp.ne.s32.totalorder %s75, %s89
    %p91 = scmp.eq.s32.totalorder %s23, 0
    %p92 = por %p90, %p91
    %s94 = sadd.s32 %s93, 1
    %p97 = scmp.eq.s32.totalorder %s17, 1
    %p98 = scmp.ne.s32.totalorder %s93, %s95
    %p99 = scmp.eq.s32.totalorder %s17, 0
    %p100 = por %p98, %p99
    %p101 = scmp.ne.s32.totalorder %s93, %s95
    %p102 = scmp.eq.s32.totalorder %s22, 1
    %p103 = por %p101, %p102
    %p104 = scmp.ne.s32.totalorder %s95, %s96
    %p105 = scmp.eq.s32.totalorder %s22, 0
    %p106 = por %p104, %p105
    %p107 = scmp.ne.s32.totalorder %s95, %s96
    %p108 = scmp.eq.s32.totalorder %s23, 1
    %p109 = por %p107, %p108
    %p111 = scmp.ne.s32.totalorder %s96, %s110
    %p112 = scmp.eq.s32.totalorder %s23, 0
    %p113 = por %p111, %p112
    %s115 = sadd.s32 %s114, 1
    %p118 = scmp.eq.s32.totalorder %s17, 1
    %p119 = scmp.ne.s32.totalorder %s114, %s116
    %p120 = scmp.eq.s32.totalorder %s17, 0
    %p121 = por %p119, %p120
    %p122 = scmp.ne.s32.totalorder %s114, %s116
    %p123 = scmp.eq.s32.totalorder %s22, 1
    %p124 = por %p122, %p123
    %p125 = scmp.ne.s32.totalorder %s116, %s117
    %p126 = scmp.eq.s32.totalorder %s22, 0
    %p127 = por %p125, %p126
    %p128 = scmp.ne.s32.totalorder %s116, %s117
    %p129 = scmp.eq.s32.totalorder %s23, 1
    %p130 = por %p128, %p129
    %p132 = scmp.ne.s32.totalorder %s117, %s131
    %p133 = scmp.eq.s32.totalorder %s23, 0
    %p134 = por %p132, %p133
    %s136 = sadd.s32 %s135, 1
    %p139 = scmp.eq.s32.totalorder %s17, 1
    %p140 = scmp.ne.s32.totalorder %s135, %s137
    %p141 = scmp.eq.s32.totalorder %s17, 0
    %p142 = por %p140, %p141
    %p143 = scmp.ne.s32.totalorder %s135, %s137
    %p144 = scmp.eq.s32.totalorder %s22, 1
    %p145 = por %p143, %p144
    %p146 = scmp.ne.s32.totalorder %s137, %s138
    %p147 = scmp.eq.s32.totalorder %s22, 0
    %p148 = por %p146, %p147
    %p149 = scmp.ne.s32.totalorder %s137, %s138
    %p150 = scmp.eq.s32.totalorder %s23, 1
    %p151 = por %p149, %p150
    %p153 = scmp.ne.s32.totalorder %s138, %s152
    %p154 = scmp.eq.s32.totalorder %s23, 0
    %p155 = por %p153, %p154
    %s157 = sadd.s32 %s156, 1
    %p160 = scmp.eq.s32.totalorder %s17, 1
    %p161 = scmp.ne.s32.totalorder %s156, %s158
    %p162 = scmp.eq.s32.totalorder %s17, 0
    %p163 = por %p161, %p162
    %p164 = scmp.ne.s32.totalorder %s156, %s158
    %p165 = scmp.eq.s32.totalorder %s22, 1
    %p166 = por %p164, %p165
    %p167 = scmp.ne.s32.totalorder %s158, %s159
    %p168 = scmp.eq.s32.totalorder %s22, 0
    %p169 = por %p167, %p168
    %p170 = scmp.ne.s32.totalorder %s158, %s159
    %p171 = scmp.eq.s32.totalorder %s23, 1
    %p172 = por %p170, %p171
    %p174 = scmp.ne.s32.totalorder %s159, %s173
    %p175 = scmp.eq.s32.totalorder %s23, 0
    %p176 = por %p174, %p175
    %s178 = sadd.s32 %s177, 1
    %p181 = scmp.eq.s32.totalorder %s17, 1
    %p182 = scmp.ne.s32.totalorder %s177, %s179
    %p183 = scmp.eq.s32.totalorder %s17, 0
    %p184 = por %p182, %p183
    %p185 = scmp.ne.s32.totalorder %s177, %s179
    %p186 = scmp.eq.s32.totalorder %s22, 1
    %p187 = por %p185, %p186
    %p188 = scmp.ne.s32.totalorder %s179, %s180
    %p189 = scmp.eq.s32.totalorder %s22, 0
    %p190 = por %p188, %p189
    %p191 = scmp.ne.s32.totalorder %s179, %s180
    %p192 = scmp.eq.s32.totalorder %s23, 1
    %p193 = por %p191, %p192
    %p195 = scmp.ne.s32.totalorder %s180, %s194
    %p196 = scmp.eq.s32.totalorder %s23, 0
    %p197 = por %p195, %p196
    %s199 = sadd.s32 %s198, 1
    %p202 = scmp.eq.s32.totalorder %s17, 1
    %p203 = scmp.ne.s32.totalorder %s198, %s200
    %p204 = scmp.eq.s32.totalorder %s17, 0
    %p205 = por %p203, %p204
    %p206 = scmp.ne.s32.totalorder %s198, %s200
    %p207 = scmp.eq.s32.totalorder %s22, 1
    %p208 = por %p206, %p207
    %p209 = scmp.ne.s32.totalorder %s200, %s201
    %p210 = scmp.eq.s32.totalorder %s22, 0
    %p211 = por %p209, %p210
    %p212 = scmp.ne.s32.totalorder %s200, %s201
    %p213 = scmp.eq.s32.totalorder %s23, 1
    %p214 = por %p212, %p213
    %p216 = scmp.ne.s32.totalorder %s201, %s215
    %p217 = scmp.eq.s32.totalorder %s23, 0
    %p218 = por %p216, %p217
    %s220 = sadd.s32 %s219, 1
    %p223 = scmp.eq.s32.totalorder %s17, 1
    %p224 = scmp.ne.s32.totalorder %s219, %s221
    %p225 = scmp.eq.s32.totalorder %s17, 0
    %p226 = por %p224, %p225
    %p227 = scmp.ne.s32.totalorder %s219, %s221
    %p228 = scmp.eq.s32.totalorder %s22, 1
    %p229 = por %p227, %p228
    %p230 = scmp.ne.s32.totalorder %s221, %s222
    %p231 = scmp.eq.s32.totalorder %s22, 0
    %p232 = por %p230, %p231
    %p233 = scmp.ne.s32.totalorder %s221, %s222
    %p234 = scmp.eq.s32.totalorder %s23, 1
    %p235 = por %p233, %p234
    %p237 = scmp.ne.s32.totalorder %s222, %s236
    %p238 = scmp.eq.s32.totalorder %s23, 0
    %p239 = por %p237, %p238
    %s241 = sadd.s32 %s240, 1
    %p244 = scmp.eq.s32.totalorder %s17, 1
    %p245 = scmp.ne.s32.totalorder %s240, %s242
    %p246 = scmp.eq.s32.totalorder %s17, 0
    %p247 = por %p245, %p246
    %p248 = scmp.ne.s32.totalorder %s240, %s242
    %p249 = scmp.eq.s32.totalorder %s22, 1
    %p250 = por %p248, %p249
    %p251 = scmp.ne.s32.totalorder %s242, %s243
    %p252 = scmp.eq.s32.totalorder %s22, 0
    %p253 = por %p251, %p252
    %p254 = scmp.ne.s32.totalorder %s242, %s243
    %p255 = scmp.eq.s32.totalorder %s23, 1
    %p256 = por %p254, %p255
    %p258 = scmp.ne.s32.totalorder %s243, %s257
    %p259 = scmp.eq.s32.totalorder %s23, 0
    %p260 = por %p258, %p259
    %s261 = ssub.s32 %s17, %s24
    %p262 = scmp.eq.s32.totalorder %s261, 0
    %s264 = sadd.s32 %s263, 1
    %s265 = scalar_select %p262, %s263, %s264
    %p268 = pneg %p262
    %p269 = scmp.eq.s32.totalorder %s17, 1
    %p270 = por %p268, %p269
    %p271 = scmp.ne.s32.totalorder %s263, %s266
    %p272 = scmp.eq.s32.totalorder %s17, 0
    %p273 = por %p271, %p272
    %p274 = scmp.ne.s32.totalorder %s263, %s266
    %p275 = scmp.eq.s32.totalorder %s22, 1
    %p276 = por %p274, %p275
    %p277 = scmp.ne.s32.totalorder %s266, %s267
    %p278 = scmp.eq.s32.totalorder %s22, 0
    %p279 = por %p277, %p278
    %p280 = scmp.ne.s32.totalorder %s266, %s267
    %p281 = scmp.eq.s32.totalorder %s23, 1
    %p282 = por %p280, %p281
    %p284 = scmp.ne.s32.totalorder %s267, %s283
    %p285 = scmp.eq.s32.totalorder %s23, 0
    %p286 = por %p284, %p285
    %p287 = scmp.le.s32.totalorder 1, %s17
    %p288 = scmp.lt.s32.totalorder %s17, 3
    %p289 = pnand %p287, %p288
    %p290 = pneg %p289
    // Predicated region
    $region9: #{tpu_custom_call.1} parent=5 // pred_check
      _
    $region10: #{tpu_custom_call.1} parent=5 // pred_check_branch
      %292 = sbr.rel (%p289) target = $region12
    $region11: #{tpu_custom_call.1} parent=5 // pred_region
      %s293 = ssub.s32 %s17, 1
      // Predicated region
      $region13: #{tpu_custom_call.1} parent=11 // pred_check
        %p294 = pneg %p64
      $region14: #{tpu_custom_call.1} parent=11 // pred_check_branch
        %296 = sbr.rel (%p294) target = $region16
      $region15: #{tpu_custom_call.1} parent=11 // pred_region
        _
      $region16: #{tpu_custom_call.1} parent=11 // pred_fallthru
        _
      // Predicated region
      $region17: #{tpu_custom_call.1} parent=11 // pred_check
        %p297 = pneg %p85
      $region18: #{tpu_custom_call.1} parent=11 // pred_check_branch
        %299 = sbr.rel (%p297) target = $region20
      $region19: #{tpu_custom_call.1} parent=11 // pred_region
        _
      $region20: #{tpu_custom_call.1} parent=11 // pred_fallthru
        _
      // Predicated region
      $region21: #{tpu_custom_call.1} parent=11 // pred_check
        %p300 = pneg %p106
      $region22: #{tpu_custom_call.1} parent=11 // pred_check_branch
        %302 = sbr.rel (%p300) target = $region24
      $region23: #{tpu_custom_call.1} parent=11 // pred_region
        _
      $region24: #{tpu_custom_call.1} parent=11 // pred_fallthru
        _
      // Predicated region
      $region25: #{tpu_custom_call.1} parent=11 // pred_check
        %p303 = pneg %p127
      $region26: #{tpu_custom_call.1} parent=11 // pred_check_branch
        %305 = sbr.rel (%p303) target = $region28
      $region27: #{tpu_custom_call.1} parent=11 // pred_region
        _
      $region28: #{tpu_custom_call.1} parent=11 // pred_fallthru
        _
      // Predicated region
      $region29: #{tpu_custom_call.1} parent=11 // pred_check
        %p306 = pneg %p148
      $region30: #{tpu_custom_call.1} parent=11 // pred_check_branch
        %308 = sbr.rel (%p306) target = $region32
      $region31: #{tpu_custom_call.1} parent=11 // pred_region
        _
      $region32: #{tpu_custom_call.1} parent=11 // pred_fallthru
        _
      // Predicated region
      $region33: #{tpu_custom_call.1} parent=11 // pred_check
        %p309 = pneg %p169
      $region34: #{tpu_custom_call.1} parent=11 // pred_check_branch
        %311 = sbr.rel (%p309) target = $region36
      $region35: #{tpu_custom_call.1} parent=11 // pred_region
        _
      $region36: #{tpu_custom_call.1} parent=11 // pred_fallthru
        _
      // Predicated region
      $region37: #{tpu_custom_call.1} parent=11 // pred_check
        %p312 = pneg %p190
      $region38: #{tpu_custom_call.1} parent=11 // pred_check_branch
        %314 = sbr.rel (%p312) target = $region40
      $region39: #{tpu_custom_call.1} parent=11 // pred_region
        _
      $region40: #{tpu_custom_call.1} parent=11 // pred_fallthru
        _
      // Predicated region
      $region41: #{tpu_custom_call.1} parent=11 // pred_check
        %p315 = pneg %p211
      $region42: #{tpu_custom_call.1} parent=11 // pred_check_branch
        %317 = sbr.rel (%p315) target = $region44
      $region43: #{tpu_custom_call.1} parent=11 // pred_region
        _
      $region44: #{tpu_custom_call.1} parent=11 // pred_fallthru
        _
      // Predicated region
      $region45: #{tpu_custom_call.1} parent=11 // pred_check
        %p318 = pneg %p232
      $region46: #{tpu_custom_call.1} parent=11 // pred_check_branch
        %320 = sbr.rel (%p318) target = $region48
      $region47: #{tpu_custom_call.1} parent=11 // pred_region
        _
      $region48: #{tpu_custom_call.1} parent=11 // pred_fallthru
        _
      // Predicated region
      $region49: #{tpu_custom_call.1} parent=11 // pred_check
        %p321 = pneg %p253
      $region50: #{tpu_custom_call.1} parent=11 // pred_check_branch
        %323 = sbr.rel (%p321) target = $region52
      $region51: #{tpu_custom_call.1} parent=11 // pred_region
        _
      $region52: #{tpu_custom_call.1} parent=11 // pred_fallthru
        _
    $region12: #{tpu_custom_call.1} parent=5 // pred_fallthru
      _
    %p324 = scmp.lt.s32.totalorder %s17, 2
    // Predicated region
    $region53: #{tpu_custom_call.1} parent=5 // pred_check
      %p325 = pneg %p324
    $region54: #{tpu_custom_call.1} parent=5 // pred_check_branch
      %327 = sbr.rel (%p325) target = $region56
    $region55: #{tpu_custom_call.1} parent=5 // pred_region
      // Predicated region
      $region57: #{tpu_custom_call.1} parent=55 // pred_check
        %p328 = pneg %p37
      $region58: #{tpu_custom_call.1} parent=55 // pred_check_branch
        %330 = sbr.rel (%p328) target = $region60
      $region59: #{tpu_custom_call.1} parent=55 // pred_region
        %s331 = smul.u32 2, %s17
        %p332 = scmp.lt.s32.totalorder %s331, 3
        %s333 = scalar_select %p332, %s331, 3
        %s334 = smul.addr %s333, 3
        %s335 = smul.addr %s334, 8
        %s336 = scalar_lea.vmem %s0, %s335
        %s337 = smul.u32 2, %s17
      $region60: #{tpu_custom_call.1} parent=55 // pred_fallthru
        _
    $region56: #{tpu_custom_call.1} parent=5 // pred_fallthru
      _
    %p338 = scmp.le.s32.totalorder 1, %s17
    %p339 = scmp.lt.s32.totalorder %s17, 3
    %p340 = pnand %p338, %p339
    %p341 = pneg %p340
    // Predicated region
    $region61: #{tpu_custom_call.1} parent=5 // pred_check
      _
    $region62: #{tpu_custom_call.1} parent=5 // pred_check_branch
      %343 = sbr.rel (%p340) target = $region64
    $region63: #{tpu_custom_call.1} parent=5 // pred_region
      %s344 = ssub.s32 %s17, 1
      %s345 = smul.u32 2, %s22
      %p346 = scmp.lt.s32.totalorder %s345, 3
      %s347 = scalar_select %p346, %s345, 3
      %s348 = smul.addr %s347, 3
      %s349 = smul.addr %s348, 8
      %s350 = scalar_lea.vmem %s0, %s349
      %p351 = pneg %p43
      %p352 = pneg %p40
      %p353 = pneg %p64
      %p354 = pneg %p61
      %p355 = pneg %p85
      %p356 = pneg %p82
      %p357 = pneg %p106
      %p358 = pneg %p103
      %p359 = pneg %p127
      %p360 = pneg %p124
      %p361 = pneg %p148
      %p362 = pneg %p145
      %p363 = pneg %p169
      %p364 = pneg %p166
      %p365 = pneg %p190
      %p366 = pneg %p187
      %p367 = pneg %p211
      %p368 = pneg %p208
      %p369 = pneg %p232
      %p370 = pneg %p229
      %p371 = pneg %p253
      %p372 = pneg %p250
      %p373 = pneg %p279
      %p374 = pneg %p276
      %s375 = smul.u32 2, %s22
      %p376 = scmp.lt.s32.totalorder %s375, 3
      %s377 = scalar_select %p376, %s375, 3
      %s378 = smul.addr %s377, 8
      %s379 = scalar_lea.vmem %s11, %s378
      %s380 = smul.u32 2, %s22
      %p381 = scmp.lt.s32.totalorder %s380, 3
      %s382 = scalar_select %p381, %s380, 3
      %s383 = smul.addr %s382, 3
      %s384 = smul.addr %s383, 8
      %s385 = scalar_lea.vmem %s0, %s384
      %s386 = smul.u32 2, %s22
      %s387 = smul.u32 2, %s22
      %p388 = scmp.lt.s32.totalorder %s387, 3
      %s389 = scalar_select %p388, %s387, 3
      %s390 = smul.addr %s389, 8
      %s391 = scalar_lea.vmem %s11, %s390
      %s392 = smul.u32 2, %s22
      %v393 = vld [vmem:[%s385] sm:$0xff]
      %v394 = vld [vmem:[%s385 + $0x8] sm:$0xff]
      %v395 = vld [vmem:[%s385 + $0x10] sm:$0xff]
      %v396 = vld [vmem:[%s385 + $0x18] sm:$0xff]
      %v397 = vld [vmem:[%s385 + $0x20] sm:$0xff]
      %v398 = vld [vmem:[%s385 + $0x28] sm:$0xff]
      %v399 = vld [vmem:[%s1] sm:$0xff]
      %v400 = vld [vmem:[%s1 + $0x8] sm:$0xff]
      %v401 = vld [vmem:[%s1 + $0x10] sm:$0xff]
      %v402 = vld [vmem:[%s1 + $0x18] sm:$0xff]
      %v403 = vld [vmem:[%s1 + $0x20] sm:$0xff]
      %v404 = vld [vmem:[%s1 + $0x28] sm:$0xff]
      %v405 = vld [vmem:[%s1 + $0x30] sm:$0xff]
      %v406 = vld [vmem:[%s1 + $0x38] sm:$0xff]
      %v407 = vld [vmem:[%s1 + $0x40] sm:$0xff]
      %v408 = vld [vmem:[%s1 + $0x48] sm:$0xff]
      %v409 = vld [vmem:[%s1 + $0x50] sm:$0xff]
      %v410 = vld [vmem:[%s1 + $0x58] sm:$0xff]
      %v411 = vld [vmem:[%s1 + $0x60] sm:$0xff]
      %v412 = vld [vmem:[%s1 + $0x68] sm:$0xff]
      %v413 = vld [vmem:[%s1 + $0x70] sm:$0xff]
      %v414 = vld [vmem:[%s1 + $0x78] sm:$0xff]
      %v415 = vld [vmem:[%s1 + $0x80] sm:$0xff]
      %v416 = vld [vmem:[%s1 + $0x88] sm:$0xff]
      %v417 = vld [vmem:[%s1 + $0x90] sm:$0xff]
      %v418 = vld [vmem:[%s1 + $0x98] sm:$0xff]
      %v419 = vld [vmem:[%s1 + $0xa0] sm:$0xff]
      %v420 = vld [vmem:[%s1 + $0xa8] sm:$0xff]
      %v421 = vld [vmem:[%s1 + $0xb0] sm:$0xff]
      %v422 = vld [vmem:[%s1 + $0xb8] sm:$0xff]
      %v423 = vld [vmem:[%s1 + $0xc0] sm:$0xff]
      %v424 = vld [vmem:[%s1 + $0xc8] sm:$0xff]
      %v425 = vld [vmem:[%s1 + $0xd0] sm:$0xff]
      %v426 = vld [vmem:[%s1 + $0xd8] sm:$0xff]
      %v427 = vld [vmem:[%s1 + $0xe0] sm:$0xff]
      %v428 = vld [vmem:[%s1 + $0xe8] sm:$0xff]
      %v429 = vld [vmem:[%s1 + $0xf0] sm:$0xff]
      %v430 = vld [vmem:[%s1 + $0xf8] sm:$0xff]
      %v431 = vld [vmem:[%s1 + $0x100] sm:$0xff]
      %v432 = vld [vmem:[%s1 + $0x108] sm:$0xff]
      %v433 = vld [vmem:[%s1 + $0x110] sm:$0xff]
      %v434 = vld [vmem:[%s1 + $0x118] sm:$0xff]
      %v435 = vld [vmem:[%s1 + $0x120] sm:$0xff]
      %v436 = vld [vmem:[%s1 + $0x128] sm:$0xff]
      %v437 = vld [vmem:[%s1 + $0x130] sm:$0xff]
      %v438 = vld [vmem:[%s1 + $0x138] sm:$0xff]
      %v439 = vld [vmem:[%s1 + $0x140] sm:$0xff]
      %v440 = vld [vmem:[%s1 + $0x148] sm:$0xff]
      %v441 = vld [vmem:[%s1 + $0x150] sm:$0xff]
      %v442 = vld [vmem:[%s1 + $0x158] sm:$0xff]
      %v443 = vld [vmem:[%s1 + $0x160] sm:$0xff]
      %v444 = vld [vmem:[%s1 + $0x168] sm:$0xff]
      %v445 = vld [vmem:[%s1 + $0x170] sm:$0xff]
      %v446 = vld [vmem:[%s1 + $0x178] sm:$0xff]
      %v447 = vld [vmem:[%s1 + $0x180] sm:$0xff]
      %v448 = vld [vmem:[%s1 + $0x188] sm:$0xff]
      %v449 = vld [vmem:[%s1 + $0x190] sm:$0xff]
      %v450 = vld [vmem:[%s1 + $0x198] sm:$0xff]
      %v451 = vld [vmem:[%s1 + $0x1a0] sm:$0xff]
      %v452 = vld [vmem:[%s1 + $0x1a8] sm:$0xff]
      %v453 = vld [vmem:[%s1 + $0x1b0] sm:$0xff]
      %v454 = vld [vmem:[%s1 + $0x1b8] sm:$0xff]
      %v455 = vld [vmem:[%s1 + $0x1c0] sm:$0xff]
      %v456 = vld [vmem:[%s1 + $0x1c8] sm:$0xff]
      %v457 = vld [vmem:[%s1 + $0x1d0] sm:$0xff]
      %v458 = vld [vmem:[%s1 + $0x1d8] sm:$0xff]
      %v459 = vld [vmem:[%s1 + $0x1e0] sm:$0xff]
      %v460 = vld [vmem:[%s1 + $0x1e8] sm:$0xff]
      %v461 = vld [vmem:[%s1 + $0x1f0] sm:$0xff]
      %v462 = vld [vmem:[%s1 + $0x1f8] sm:$0xff]
      %v463 = vld [vmem:[%s1 + $0x200] sm:$0xff]
      %v464 = vld [vmem:[%s1 + $0x208] sm:$0xff]
      %v465 = vld [vmem:[%s1 + $0x210] sm:$0xff]
      %v466 = vld [vmem:[%s1 + $0x218] sm:$0xff]
      %v467 = vld [vmem:[%s1 + $0x220] sm:$0xff]
      %v468 = vld [vmem:[%s1 + $0x228] sm:$0xff]
      %v469 = vld [vmem:[%s1 + $0x230] sm:$0xff]
      %v470 = vld [vmem:[%s1 + $0x238] sm:$0xff]
      %v471 = vld [vmem:[%s1 + $0x240] sm:$0xff]
      %v472 = vld [vmem:[%s1 + $0x248] sm:$0xff]
      %v473 = vld [vmem:[%s1 + $0x250] sm:$0xf]
      %v474 = vld [vmem:[%s1 + $0x258] sm:$0xf]
      %v475 = vld [vmem:[%s4] sm:$0x3]
      %v477 = vlaneseq
      %v478 = vshrl.u32 %v477, 7
      %v479 = vsub.s32 0, %v478
      %v480 = vrot.slane %v475, %v479
      %v481 = vlaneseq
      %v482 = vshrl.u32 %v481, 7
      %v483 = vsub.s32 1, %v482
      %v484 = vrot.slane %v475, %v483
      %vm487 = vcmask 359424
      %v489 = vsel %vm487, %v395, 0
      %v492 = vsel %vm487, %v398, 0
      %vm494 = vcmask 1043456
      %v496 = vsel %vm494, %v473, 0
      %v499 = vsel %vm494, %v474, 0
      %501 = vmatprep.subr.mxu0 %v430
      %502 = vmatpush1.msra.mxu0 %v429
      %503 = vmatprep.subr.mxu0 %v428
      %504 = vmatpush1.msra.mxu0 %v427
      %505 = vmatprep.subr.mxu0 %v426
      %506 = vmatpush1.msra.mxu0 %v425
      %507 = vmatprep.subr.mxu0 %v424
      %508 = vmatpush1.msra.mxu0 %v423
      %509 = vmatprep.subr.mxu0 %v422
      %510 = vmatpush1.msra.mxu0 %v421
      %511 = vmatprep.subr.mxu0 %v420
      %512 = vmatpush1.msra.mxu0 %v419
      %513 = vmatprep.subr.mxu0 %v418
      %514 = vmatpush1.msra.mxu0 %v417
      %515 = vmatprep.subr.mxu0 %v416
      %516 = vmatpush1.msra.mxu0 %v415
      %517 = vmatprep.subr.mxu0 %v414
      %518 = vmatpush1.msra.mxu0 %v413
      %519 = vmatprep.subr.mxu0 %v412
      %520 = vmatpush1.msra.mxu0 %v411
      %521 = vmatprep.subr.mxu0 %v410
      %522 = vmatpush1.msra.mxu0 %v409
      %523 = vmatprep.subr.mxu0 %v408
      %524 = vmatpush1.msra.mxu0 %v407
      %525 = vmatprep.subr.mxu0 %v406
      %526 = vmatpush1.msra.mxu0 %v405
      %527 = vmatprep.subr.mxu0 %v404
      %528 = vmatpush1.msra.mxu0 %v403
      %529 = vmatprep.subr.mxu0 %v402
      %530 = vmatpush1.msra.mxu0 %v401
      %531 = vmatprep.subr.mxu0 %v400
      %532 = vmatpush1.msra.mxu0 %v399
      %533 = vmatprep.subr.mxu0 %v462
      %534 = vmatpush2.msra.mxu0 %v461
      %535 = vmatprep.subr.mxu0 %v460
      %536 = vmatpush2.msra.mxu0 %v459
      %537 = vmatprep.subr.mxu0 %v458
      %538 = vmatpush2.msra.mxu0 %v457
      %539 = vmatprep.subr.mxu0 %v456
      %540 = vmatpush2.msra.mxu0 %v455
      %541 = vmatprep.subr.mxu0 %v454
      %542 = vmatpush2.msra.mxu0 %v453
      %543 = vmatprep.subr.mxu0 %v452
      %544 = vmatpush2.msra.mxu0 %v451
      %545 = vmatprep.subr.mxu0 %v450
      %546 = vmatpush2.msra.mxu0 %v449
      %547 = vmatprep.subr.mxu0 %v448
      %548 = vmatpush2.msra.mxu0 %v447
      %549 = vmatprep.subr.mxu0 %v446
      %550 = vmatpush2.msra.mxu0 %v445
      %551 = vmatprep.subr.mxu0 %v444
      %552 = vmatpush2.msra.mxu0 %v443
      %553 = vmatprep.subr.mxu0 %v442
      %554 = vmatpush2.msra.mxu0 %v441
      %555 = vmatprep.subr.mxu0 %v440
      %556 = vmatpush2.msra.mxu0 %v439
      %557 = vmatprep.subr.mxu0 %v438
      %558 = vmatpush2.msra.mxu0 %v437
      %559 = vmatprep.subr.mxu0 %v436
      %560 = vmatpush2.msra.mxu0 %v435
      %561 = vmatprep.subr.mxu0 %v434
      %562 = vmatpush2.msra.mxu0 %v433
      %563 = vmatprep.subr.mxu0 %v432
      %564 = vmatpush2.msra.mxu0 %v431
      %565 = vmatprep.mubr.f32.mxu0 %v394
      %566 = vmatmul.mubr.f32.gmra.mxu0 %v393
      %v567 = vpop.f32.mrf.mxu0
      %v568 = vadd.f32 %v480, %v567
      %v569 = vpop.f32.mrf.mxu0
      %v570 = vadd.f32 %v484, %v569
      %571 = vmatprep.mubr.f32.mxu0 %v397
      %572 = vmatmul.mubr.f32.gmra.mxu0 %v396
      %v573 = vpop.f32.mrf.mxu0
      %v574 = vadd.f32 %v480, %v573
      %v575 = vpop.f32.mrf.mxu0
      %v576 = vadd.f32 %v484, %v575
      %577 = vdwg.mxu0
      %578 = vmatprep.subr.mxu0 0.0
      %579 = vmatpush1.msra.mxu0 0.0
      %580 = vmatprep.subr.mxu0 0.0
      %581 = vmatpush1.msra.mxu0 0.0
      %582 = vmatprep.subr.mxu0 0.0
      %583 = vmatpush1.msra.mxu0 0.0
      %584 = vmatprep.subr.mxu0 0.0
      %585 = vmatpush1.msra.mxu0 0.0
      %586 = vmatprep.subr.mxu0 0.0
      %587 = vmatpush1.msra.mxu0 0.0
      %588 = vmatprep.subr.mxu0 0.0
      %589 = vmatpush1.msra.mxu0 0.0
      %590 = vmatprep.subr.mxu0 0.0
      %591 = vmatpush1.msra.mxu0 0.0
      %592 = vmatprep.subr.mxu0 0.0
      %593 = vmatpush1.msra.mxu0 0.0
      %594 = vmatprep.subr.mxu0 0.0
      %595 = vmatpush1.msra.mxu0 0.0
      %596 = vmatprep.subr.mxu0 0.0
      %597 = vmatpush1.msra.mxu0 0.0
      %598 = vmatprep.subr.mxu0 %v499
      %599 = vmatpush1.msra.mxu0 %v496
      %600 = vmatprep.subr.mxu0 %v472
      %601 = vmatpush1.msra.mxu0 %v471
      %602 = vmatprep.subr.mxu0 %v470
      %603 = vmatpush1.msra.mxu0 %v469
      %604 = vmatprep.subr.mxu0 %v468
      %605 = vmatpush1.msra.mxu0 %v467
      %606 = vmatprep.subr.mxu0 %v466
      %607 = vmatpush1.msra.mxu0 %v465
      %608 = vmatprep.subr.mxu0 %v464
      %609 = vmatpush1.msra.mxu0 %v463
      %610 = vmatprep.subr.mxu0 0.0
      %611 = vmatpush2.msra.mxu0 0.0
      %612 = vmatprep.subr.mxu0 0.0
      %613 = vmatpush2.msra.mxu0 0.0
      %614 = vmatprep.subr.mxu0 0.0
      %615 = vmatpush2.msra.mxu0 0.0
      %616 = vmatprep.subr.mxu0 0.0
      %617 = vmatpush2.msra.mxu0 0.0
      %618 = vmatprep.subr.mxu0 0.0
      %619 = vmatpush2.msra.mxu0 0.0
      %620 = vmatprep.subr.mxu0 0.0
      %621 = vmatpush2.msra.mxu0 0.0
      %622 = vmatprep.subr.mxu0 0.0
      %623 = vmatpush2.msra.mxu0 0.0
      %624 = vmatprep.subr.mxu0 0.0
      %625 = vmatpush2.msra.mxu0 0.0
      %626 = vmatprep.subr.mxu0 0.0
      %627 = vmatpush2.msra.mxu0 0.0
      %628 = vmatprep.subr.mxu0 0.0
      %629 = vmatpush2.msra.mxu0 0.0
      %630 = vmatprep.subr.mxu0 0.0
      %631 = vmatpush2.msra.mxu0 0.0
      %632 = vmatprep.subr.mxu0 0.0
      %633 = vmatpush2.msra.mxu0 0.0
      %634 = vmatprep.subr.mxu0 0.0
      %635 = vmatpush2.msra.mxu0 0.0
      %636 = vmatprep.subr.mxu0 0.0
      %637 = vmatpush2.msra.mxu0 0.0
      %638 = vmatprep.subr.mxu0 0.0
      %639 = vmatpush2.msra.mxu0 0.0
      %640 = vmatprep.subr.mxu0 0.0
      %641 = vmatpush2.msra.mxu0 0.0
      %642 = vmatprep.mubr.f32.mxu0 0.0
      %643 = vmatmul.mubr.f32.gmra.mxu0 %v489
      %v644 = vpop.f32.mrf.mxu0
      %v645 = vadd.f32 %v568, %v644
      %v646 = vpop.f32.mrf.mxu0
      %v647 = vadd.f32 %v570, %v646
      %648 = vmatprep.mubr.f32.mxu0 0.0
      %649 = vmatmul.mubr.f32.gmra.mxu0 %v492
      %v650 = vpop.f32.mrf.mxu0
      %v651 = vadd.f32 %v574, %v650
      %v652 = vpop.f32.mrf.mxu0
      %v653 = vadd.f32 %v576, %v652
      %654 = vdwg.mxu0
      %v655 = vld [vmem:[%s2] sm:$0xff]
      %v656 = vld [vmem:[%s2 + $0x8] sm:$0xff]
      %v657 = vld [vmem:[%s2 + $0x10] sm:$0xff]
      %v658 = vld [vmem:[%s2 + $0x18] sm:$0xff]
      %v659 = vld [vmem:[%s2 + $0x20] sm:$0xff]
      %v660 = vld [vmem:[%s2 + $0x28] sm:$0xff]
      %v661 = vld [vmem:[%s2 + $0x30] sm:$0xff]
      %v662 = vld [vmem:[%s2 + $0x38] sm:$0xff]
      %v663 = vld [vmem:[%s2 + $0x40] sm:$0xff]
      %v664 = vld [vmem:[%s2 + $0x48] sm:$0xff]
      %v665 = vld [vmem:[%s2 + $0x50] sm:$0xff]
      %v666 = vld [vmem:[%s2 + $0x58] sm:$0xff]
      %v667 = vld [vmem:[%s2 + $0x60] sm:$0xff]
      %v668 = vld [vmem:[%s2 + $0x68] sm:$0xff]
      %v669 = vld [vmem:[%s2 + $0x70] sm:$0xff]
      %v670 = vld [vmem:[%s2 + $0x78] sm:$0xff]
      %v671 = vld [vmem:[%s2 + $0x80] sm:$0xff]
      %v672 = vld [vmem:[%s2 + $0x88] sm:$0xff]
      %v673 = vld [vmem:[%s2 + $0x90] sm:$0xff]
      %v674 = vld [vmem:[%s2 + $0x98] sm:$0xff]
      %v675 = vld [vmem:[%s2 + $0xa0] sm:$0xff]
      %v676 = vld [vmem:[%s2 + $0xa8] sm:$0xff]
      %v677 = vld [vmem:[%s2 + $0xb0] sm:$0xff]
      %v678 = vld [vmem:[%s2 + $0xb8] sm:$0xff]
      %v679 = vld [vmem:[%s2 + $0xc0] sm:$0xff]
      %v680 = vld [vmem:[%s2 + $0xc8] sm:$0xff]
      %v681 = vld [vmem:[%s2 + $0xd0] sm:$0xff]
      %v682 = vld [vmem:[%s2 + $0xd8] sm:$0xff]
      %v683 = vld [vmem:[%s2 + $0xe0] sm:$0xff]
      %v684 = vld [vmem:[%s2 + $0xe8] sm:$0xff]
      %v685 = vld [vmem:[%s2 + $0xf0] sm:$0xff]
      %v686 = vld [vmem:[%s2 + $0xf8] sm:$0xff]
      %v687 = vld [vmem:[%s2 + $0x100] sm:$0xff]
      %v688 = vld [vmem:[%s2 + $0x108] sm:$0xff]
      %v689 = vld [vmem:[%s2 + $0x110] sm:$0xff]
      %v690 = vld [vmem:[%s2 + $0x118] sm:$0xff]
      %v691 = vld [vmem:[%s2 + $0x120] sm:$0xff]
      %v692 = vld [vmem:[%s2 + $0x128] sm:$0xff]
      %v693 = vld [vmem:[%s2 + $0x130] sm:$0xff]
      %v694 = vld [vmem:[%s2 + $0x138] sm:$0xff]
      %v695 = vld [vmem:[%s2 + $0x140] sm:$0xff]
      %v696 = vld [vmem:[%s2 + $0x148] sm:$0xff]
      %v697 = vld [vmem:[%s2 + $0x150] sm:$0xff]
      %v698 = vld [vmem:[%s2 + $0x158] sm:$0xff]
      %v699 = vld [vmem:[%s2 + $0x160] sm:$0xff]
      %v700 = vld [vmem:[%s2 + $0x168] sm:$0xff]
      %v701 = vld [vmem:[%s2 + $0x170] sm:$0xff]
      %v702 = vld [vmem:[%s2 + $0x178] sm:$0xff]
      %v703 = vld [vmem:[%s2 + $0x180] sm:$0xff]
      %v704 = vld [vmem:[%s2 + $0x188] sm:$0xff]
      %v705 = vld [vmem:[%s2 + $0x190] sm:$0xff]
      %v706 = vld [vmem:[%s2 + $0x198] sm:$0xff]
      %v707 = vld [vmem:[%s2 + $0x1a0] sm:$0xff]
      %v708 = vld [vmem:[%s2 + $0x1a8] sm:$0xff]
      %v709 = vld [vmem:[%s2 + $0x1b0] sm:$0xff]
      %v710 = vld [vmem:[%s2 + $0x1b8] sm:$0xff]
      %v711 = vld [vmem:[%s2 + $0x1c0] sm:$0xff]
      %v712 = vld [vmem:[%s2 + $0x1c8] sm:$0xff]
      %v713 = vld [vmem:[%s2 + $0x1d0] sm:$0xff]
      %v714 = vld [vmem:[%s2 + $0x1d8] sm:$0xff]
      %v715 = vld [vmem:[%s2 + $0x1e0] sm:$0xff]
      %v716 = vld [vmem:[%s2 + $0x1e8] sm:$0xff]
      %v717 = vld [vmem:[%s2 + $0x1f0] sm:$0xff]
      %v718 = vld [vmem:[%s2 + $0x1f8] sm:$0xff]
      %v719 = vld [vmem:[%s2 + $0x200] sm:$0xff]
      %v720 = vld [vmem:[%s2 + $0x208] sm:$0xff]
      %v721 = vld [vmem:[%s2 + $0x210] sm:$0xff]
      %v722 = vld [vmem:[%s2 + $0x218] sm:$0xff]
      %v723 = vld [vmem:[%s2 + $0x220] sm:$0xff]
      %v724 = vld [vmem:[%s2 + $0x228] sm:$0xff]
      %v725 = vld [vmem:[%s2 + $0x230] sm:$0xff]
      %v726 = vld [vmem:[%s2 + $0x238] sm:$0xff]
      %v727 = vld [vmem:[%s2 + $0x240] sm:$0xff]
      %v728 = vld [vmem:[%s2 + $0x248] sm:$0xff]
      %v729 = vld [vmem:[%s2 + $0x250] sm:$0xf]
      %v730 = vld [vmem:[%s2 + $0x258] sm:$0xf]
      %v731 = vld [vmem:[%s5] sm:$0x3]
      %v733 = vlaneseq
      %v734 = vshrl.u32 %v733, 7
      %v735 = vsub.s32 0, %v734
      %v736 = vrot.slane %v731, %v735
      %v737 = vlaneseq
      %v738 = vshrl.u32 %v737, 7
      %v739 = vsub.s32 1, %v738
      %v740 = vrot.slane %v731, %v739
      %v744 = vsel %vm494, %v729, 0
      %v747 = vsel %vm494, %v730, 0
      %749 = vmatprep.subr.mxu0 %v686
      %750 = vmatpush1.msra.mxu0 %v685
      %751 = vmatprep.subr.mxu0 %v684
      %752 = vmatpush1.msra.mxu0 %v683
      %753 = vmatprep.subr.mxu0 %v682
      %754 = vmatpush1.msra.mxu0 %v681
      %755 = vmatprep.subr.mxu0 %v680
      %756 = vmatpush1.msra.mxu0 %v679
      %757 = vmatprep.subr.mxu0 %v678
      %758 = vmatpush1.msra.mxu0 %v677
      %759 = vmatprep.subr.mxu0 %v676
      %760 = vmatpush1.msra.mxu0 %v675
      %761 = vmatprep.subr.mxu0 %v674
      %762 = vmatpush1.msra.mxu0 %v673
      %763 = vmatprep.subr.mxu0 %v672
      %764 = vmatpush1.msra.mxu0 %v671
      %765 = vmatprep.subr.mxu0 %v670
      %766 = vmatpush1.msra.mxu0 %v669
      %767 = vmatprep.subr.mxu0 %v668
      %768 = vmatpush1.msra.mxu0 %v667
      %769 = vmatprep.subr.mxu0 %v666
      %770 = vmatpush1.msra.mxu0 %v665
      %771 = vmatprep.subr.mxu0 %v664
      %772 = vmatpush1.msra.mxu0 %v663
      %773 = vmatprep.subr.mxu0 %v662
      %774 = vmatpush1.msra.mxu0 %v661
      %775 = vmatprep.subr.mxu0 %v660
      %776 = vmatpush1.msra.mxu0 %v659
      %777 = vmatprep.subr.mxu0 %v658
      %778 = vmatpush1.msra.mxu0 %v657
      %779 = vmatprep.subr.mxu0 %v656
      %780 = vmatpush1.msra.mxu0 %v655
      %781 = vmatprep.subr.mxu0 %v718
      %782 = vmatpush2.msra.mxu0 %v717
      %783 = vmatprep.subr.mxu0 %v716
      %784 = vmatpush2.msra.mxu0 %v715
      %785 = vmatprep.subr.mxu0 %v714
      %786 = vmatpush2.msra.mxu0 %v713
      %787 = vmatprep.subr.mxu0 %v712
      %788 = vmatpush2.msra.mxu0 %v711
      %789 = vmatprep.subr.mxu0 %v710
      %790 = vmatpush2.msra.mxu0 %v709
      %791 = vmatprep.subr.mxu0 %v708
      %792 = vmatpush2.msra.mxu0 %v707
      %793 = vmatprep.subr.mxu0 %v706
      %794 = vmatpush2.msra.mxu0 %v705
      %795 = vmatprep.subr.mxu0 %v704
      %796 = vmatpush2.msra.mxu0 %v703
      %797 = vmatprep.subr.mxu0 %v702
      %798 = vmatpush2.msra.mxu0 %v701
      %799 = vmatprep.subr.mxu0 %v700
      %800 = vmatpush2.msra.mxu0 %v699
      %801 = vmatprep.subr.mxu0 %v698
      %802 = vmatpush2.msra.mxu0 %v697
      %803 = vmatprep.subr.mxu0 %v696
      %804 = vmatpush2.msra.mxu0 %v695
      %805 = vmatprep.subr.mxu0 %v694
      %806 = vmatpush2.msra.mxu0 %v693
      %807 = vmatprep.subr.mxu0 %v692
      %808 = vmatpush2.msra.mxu0 %v691
      %809 = vmatprep.subr.mxu0 %v690
      %810 = vmatpush2.msra.mxu0 %v689
      %811 = vmatprep.subr.mxu0 %v688
      %812 = vmatpush2.msra.mxu0 %v687
      %813 = vmatprep.mubr.f32.mxu0 %v394
      %814 = vmatmul.mubr.f32.gmra.mxu0 %v393
      %v815 = vpop.f32.mrf.mxu0
      %v816 = vadd.f32 %v736, %v815
      %v817 = vpop.f32.mrf.mxu0
      %v818 = vadd.f32 %v740, %v817
      %819 = vmatprep.mubr.f32.mxu0 %v397
      %820 = vmatmul.mubr.f32.gmra.mxu0 %v396
      %v821 = vpop.f32.mrf.mxu0
      %v822 = vadd.f32 %v736, %v821
      %v823 = vpop.f32.mrf.mxu0
      %v824 = vadd.f32 %v740, %v823
      %825 = vdwg.mxu0
      %826 = vmatprep.subr.mxu0 0.0
      %827 = vmatpush1.msra.mxu0 0.0
      %828 = vmatprep.subr.mxu0 0.0
      %829 = vmatpush1.msra.mxu0 0.0
      %830 = vmatprep.subr.mxu0 0.0
      %831 = vmatpush1.msra.mxu0 0.0
      %832 = vmatprep.subr.mxu0 0.0
      %833 = vmatpush1.msra.mxu0 0.0
      %834 = vmatprep.subr.mxu0 0.0
      %835 = vmatpush1.msra.mxu0 0.0
      %836 = vmatprep.subr.mxu0 0.0
      %837 = vmatpush1.msra.mxu0 0.0
      %838 = vmatprep.subr.mxu0 0.0
      %839 = vmatpush1.msra.mxu0 0.0
      %840 = vmatprep.subr.mxu0 0.0
      %841 = vmatpush1.msra.mxu0 0.0
      %842 = vmatprep.subr.mxu0 0.0
      %843 = vmatpush1.msra.mxu0 0.0
      %844 = vmatprep.subr.mxu0 0.0
      %845 = vmatpush1.msra.mxu0 0.0
      %846 = vmatprep.subr.mxu0 %v747
      %847 = vmatpush1.msra.mxu0 %v744
      %848 = vmatprep.subr.mxu0 %v728
      %849 = vmatpush1.msra.mxu0 %v727
      %850 = vmatprep.subr.mxu0 %v726
      %851 = vmatpush1.msra.mxu0 %v725
      %852 = vmatprep.subr.mxu0 %v724
      %853 = vmatpush1.msra.mxu0 %v723
      %854 = vmatprep.subr.mxu0 %v722
      %855 = vmatpush1.msra.mxu0 %v721
      %856 = vmatprep.subr.mxu0 %v720
      %857 = vmatpush1.msra.mxu0 %v719
      %858 = vmatprep.subr.mxu0 0.0
      %859 = vmatpush2.msra.mxu0 0.0
      %860 = vmatprep.subr.mxu0 0.0
      %861 = vmatpush2.msra.mxu0 0.0
      %862 = vmatprep.subr.mxu0 0.0
      %863 = vmatpush2.msra.mxu0 0.0
      %864 = vmatprep.subr.mxu0 0.0
      %865 = vmatpush2.msra.mxu0 0.0
      %866 = vmatprep.subr.mxu0 0.0
      %867 = vmatpush2.msra.mxu0 0.0
      %868 = vmatprep.subr.mxu0 0.0
      %869 = vmatpush2.msra.mxu0 0.0
      %870 = vmatprep.subr.mxu0 0.0
      %871 = vmatpush2.msra.mxu0 0.0
      %872 = vmatprep.subr.mxu0 0.0
      %873 = vmatpush2.msra.mxu0 0.0
      %874 = vmatprep.subr.mxu0 0.0
      %875 = vmatpush2.msra.mxu0 0.0
      %876 = vmatprep.subr.mxu0 0.0
      %877 = vmatpush2.msra.mxu0 0.0
      %878 = vmatprep.subr.mxu0 0.0
      %879 = vmatpush2.msra.mxu0 0.0
      %880 = vmatprep.subr.mxu0 0.0
      %881 = vmatpush2.msra.mxu0 0.0
      %882 = vmatprep.subr.mxu0 0.0
      %883 = vmatpush2.msra.mxu0 0.0
      %884 = vmatprep.subr.mxu0 0.0
      %885 = vmatpush2.msra.mxu0 0.0
      %886 = vmatprep.subr.mxu0 0.0
      %887 = vmatpush2.msra.mxu0 0.0
      %888 = vmatprep.subr.mxu0 0.0
      %889 = vmatpush2.msra.mxu0 0.0
      %890 = vmatprep.mubr.f32.mxu0 0.0
      %891 = vmatmul.mubr.f32.gmra.mxu0 %v489
      %v892 = vpop.f32.mrf.mxu0
      %v893 = vadd.f32 %v816, %v892
      %v894 = vpop.f32.mrf.mxu0
      %v895 = vadd.f32 %v818, %v894
      %896 = vmatprep.mubr.f32.mxu0 0.0
      %897 = vmatmul.mubr.f32.gmra.mxu0 %v492
      %v898 = vpop.f32.mrf.mxu0
      %v899 = vadd.f32 %v822, %v898
      %v900 = vpop.f32.mrf.mxu0
      %v901 = vadd.f32 %v824, %v900
      %902 = vdwg.mxu0
      %v903 = vld [vmem:[%s3] sm:$0xff]
      %v904 = vld [vmem:[%s3 + $0x8] sm:$0xff]
      %v905 = vld [vmem:[%s3 + $0x10] sm:$0xff]
      %v906 = vld [vmem:[%s3 + $0x18] sm:$0xff]
      %v907 = vld [vmem:[%s3 + $0x20] sm:$0xff]
      %v908 = vld [vmem:[%s3 + $0x28] sm:$0xff]
      %v909 = vld [vmem:[%s3 + $0x30] sm:$0xff]
      %v910 = vld [vmem:[%s3 + $0x38] sm:$0xff]
      %v911 = vld [vmem:[%s3 + $0x40] sm:$0xff]
      %v912 = vld [vmem:[%s3 + $0x48] sm:$0xff]
      %v913 = vld [vmem:[%s3 + $0x50] sm:$0xff]
      %v914 = vld [vmem:[%s3 + $0x58] sm:$0xff]
      %v915 = vld [vmem:[%s3 + $0x60] sm:$0xff]
      %v916 = vld [vmem:[%s3 + $0x68] sm:$0xff]
      %v917 = vld [vmem:[%s3 + $0x70] sm:$0xff]
      %v918 = vld [vmem:[%s3 + $0x78] sm:$0xff]
      %v919 = vld [vmem:[%s3 + $0x80] sm:$0xff]
      %v920 = vld [vmem:[%s3 + $0x88] sm:$0xff]
      %v921 = vld [vmem:[%s3 + $0x90] sm:$0xff]
      %v922 = vld [vmem:[%s3 + $0x98] sm:$0xff]
      %v923 = vld [vmem:[%s3 + $0xa0] sm:$0xff]
      %v924 = vld [vmem:[%s3 + $0xa8] sm:$0xff]
      %v925 = vld [vmem:[%s3 + $0xb0] sm:$0xff]
      %v926 = vld [vmem:[%s3 + $0xb8] sm:$0xff]
      %v927 = vld [vmem:[%s3 + $0xc0] sm:$0xff]
      %v928 = vld [vmem:[%s3 + $0xc8] sm:$0xff]
      %v929 = vld [vmem:[%s3 + $0xd0] sm:$0xff]
      %v930 = vld [vmem:[%s3 + $0xd8] sm:$0xff]
      %v931 = vld [vmem:[%s3 + $0xe0] sm:$0xff]
      %v932 = vld [vmem:[%s3 + $0xe8] sm:$0xff]
      %v933 = vld [vmem:[%s3 + $0xf0] sm:$0xff]
      %v934 = vld [vmem:[%s3 + $0xf8] sm:$0xff]
      %v935 = vld [vmem:[%s3 + $0x100] sm:$0xff]
      %v936 = vld [vmem:[%s3 + $0x108] sm:$0xff]
      %v937 = vld [vmem:[%s3 + $0x110] sm:$0xff]
      %v938 = vld [vmem:[%s3 + $0x118] sm:$0xff]
      %v939 = vld [vmem:[%s3 + $0x120] sm:$0xff]
      %v940 = vld [vmem:[%s3 + $0x128] sm:$0xff]
      %v941 = vld [vmem:[%s3 + $0x130] sm:$0xff]
      %v942 = vld [vmem:[%s3 + $0x138] sm:$0xff]
      %v943 = vld [vmem:[%s3 + $0x140] sm:$0xff]
      %v944 = vld [vmem:[%s3 + $0x148] sm:$0xff]
      %v945 = vld [vmem:[%s3 + $0x150] sm:$0xff]
      %v946 = vld [vmem:[%s3 + $0x158] sm:$0xff]
      %v947 = vld [vmem:[%s3 + $0x160] sm:$0xff]
      %v948 = vld [vmem:[%s3 + $0x168] sm:$0xff]
      %v949 = vld [vmem:[%s3 + $0x170] sm:$0xff]
      %v950 = vld [vmem:[%s3 + $0x178] sm:$0xff]
      %v951 = vld [vmem:[%s3 + $0x180] sm:$0xff]
      %v952 = vld [vmem:[%s3 + $0x188] sm:$0xff]
      %v953 = vld [vmem:[%s3 + $0x190] sm:$0xff]
      %v954 = vld [vmem:[%s3 + $0x198] sm:$0xff]
      %v955 = vld [vmem:[%s3 + $0x1a0] sm:$0xff]
      %v956 = vld [vmem:[%s3 + $0x1a8] sm:$0xff]
      %v957 = vld [vmem:[%s3 + $0x1b0] sm:$0xff]
      %v958 = vld [vmem:[%s3 + $0x1b8] sm:$0xff]
      %v959 = vld [vmem:[%s3 + $0x1c0] sm:$0xff]
      %v960 = vld [vmem:[%s3 + $0x1c8] sm:$0xff]
      %v961 = vld [vmem:[%s3 + $0x1d0] sm:$0xff]
      %v962 = vld [vmem:[%s3 + $0x1d8] sm:$0xff]
      %v963 = vld [vmem:[%s3 + $0x1e0] sm:$0xff]
      %v964 = vld [vmem:[%s3 + $0x1e8] sm:$0xff]
      %v965 = vld [vmem:[%s3 + $0x1f0] sm:$0xff]
      %v966 = vld [vmem:[%s3 + $0x1f8] sm:$0xff]
      %v967 = vld [vmem:[%s3 + $0x200] sm:$0xff]
      %v968 = vld [vmem:[%s3 + $0x208] sm:$0xff]
      %v969 = vld [vmem:[%s3 + $0x210] sm:$0xff]
      %v970 = vld [vmem:[%s3 + $0x218] sm:$0xff]
      %v971 = vld [vmem:[%s3 + $0x220] sm:$0xff]
      %v972 = vld [vmem:[%s3 + $0x228] sm:$0xff]
      %v973 = vld [vmem:[%s3 + $0x230] sm:$0xff]
      %v974 = vld [vmem:[%s3 + $0x238] sm:$0xff]
      %v975 = vld [vmem:[%s3 + $0x240] sm:$0xff]
      %v976 = vld [vmem:[%s3 + $0x248] sm:$0xff]
      %v977 = vld [vmem:[%s3 + $0x250] sm:$0xf]
      %v978 = vld [vmem:[%s3 + $0x258] sm:$0xf]
      %v979 = vld [vmem:[%s6] sm:$0x3]
      %v981 = vlaneseq
      %v982 = vshrl.u32 %v981, 7
      %v983 = vsub.s32 0, %v982
      %v984 = vrot.slane %v979, %v983
      %v985 = vlaneseq
      %v986 = vshrl.u32 %v985, 7
      %v987 = vsub.s32 1, %v986
      %v988 = vrot.slane %v979, %v987
      %v992 = vsel %vm494, %v977, 0
      %v995 = vsel %vm494, %v978, 0
      %997 = vmatprep.subr.mxu0 %v934
      %998 = vmatpush1.msra.mxu0 %v933
      %999 = vmatprep.subr.mxu0 %v932
      %1000 = vmatpush1.msra.mxu0 %v931
      %1001 = vmatprep.subr.mxu0 %v930
      %1002 = vmatpush1.msra.mxu0 %v929
      %1003 = vmatprep.subr.mxu0 %v928
      %1004 = vmatpush1.msra.mxu0 %v927
      %1005 = vmatprep.subr.mxu0 %v926
      %1006 = vmatpush1.msra.mxu0 %v925
      %1007 = vmatprep.subr.mxu0 %v924
      %1008 = vmatpush1.msra.mxu0 %v923
      %1009 = vmatprep.subr.mxu0 %v922
      %1010 = vmatpush1.msra.mxu0 %v921
      %1011 = vmatprep.subr.mxu0 %v920
      %1012 = vmatpush1.msra.mxu0 %v919
      %1013 = vmatprep.subr.mxu0 %v918
      %1014 = vmatpush1.msra.mxu0 %v917
      %1015 = vmatprep.subr.mxu0 %v916
      %1016 = vmatpush1.msra.mxu0 %v915
      %1017 = vmatprep.subr.mxu0 %v914
      %1018 = vmatpush1.msra.mxu0 %v913
      %1019 = vmatprep.subr.mxu0 %v912
      %1020 = vmatpush1.msra.mxu0 %v911
      %1021 = vmatprep.subr.mxu0 %v910
      %1022 = vmatpush1.msra.mxu0 %v909
      %1023 = vmatprep.subr.mxu0 %v908
      %1024 = vmatpush1.msra.mxu0 %v907
      %1025 = vmatprep.subr.mxu0 %v906
      %1026 = vmatpush1.msra.mxu0 %v905
      %1027 = vmatprep.subr.mxu0 %v904
      %1028 = vmatpush1.msra.mxu0 %v903
      %1029 = vmatprep.subr.mxu0 %v966
      %1030 = vmatpush2.msra.mxu0 %v965
      %1031 = vmatprep.subr.mxu0 %v964
      %1032 = vmatpush2.msra.mxu0 %v963
      %1033 = vmatprep.subr.mxu0 %v962
      %1034 = vmatpush2.msra.mxu0 %v961
      %1035 = vmatprep.subr.mxu0 %v960
      %1036 = vmatpush2.msra.mxu0 %v959
      %1037 = vmatprep.subr.mxu0 %v958
      %1038 = vmatpush2.msra.mxu0 %v957
      %1039 = vmatprep.subr.mxu0 %v956
      %1040 = vmatpush2.msra.mxu0 %v955
      %1041 = vmatprep.subr.mxu0 %v954
      %1042 = vmatpush2.msra.mxu0 %v953
      %1043 = vmatprep.subr.mxu0 %v952
      %1044 = vmatpush2.msra.mxu0 %v951
      %1045 = vmatprep.subr.mxu0 %v950
      %1046 = vmatpush2.msra.mxu0 %v949
      %1047 = vmatprep.subr.mxu0 %v948
      %1048 = vmatpush2.msra.mxu0 %v947
      %1049 = vmatprep.subr.mxu0 %v946
      %1050 = vmatpush2.msra.mxu0 %v945
      %1051 = vmatprep.subr.mxu0 %v944
      %1052 = vmatpush2.msra.mxu0 %v943
      %1053 = vmatprep.subr.mxu0 %v942
      %1054 = vmatpush2.msra.mxu0 %v941
      %1055 = vmatprep.subr.mxu0 %v940
      %1056 = vmatpush2.msra.mxu0 %v939
      %1057 = vmatprep.subr.mxu0 %v938
      %1058 = vmatpush2.msra.mxu0 %v937
      %1059 = vmatprep.subr.mxu0 %v936
      %1060 = vmatpush2.msra.mxu0 %v935
      %1061 = vmatprep.mubr.f32.mxu0 %v394
      %1062 = vmatmul.mubr.f32.gmra.mxu0 %v393
      %v1063 = vpop.f32.mrf.mxu0
      %v1064 = vadd.f32 %v984, %v1063
      %v1065 = vpop.f32.mrf.mxu0
      %v1066 = vadd.f32 %v988, %v1065
      %1067 = vmatprep.mubr.f32.mxu0 %v397
      %1068 = vmatmul.mubr.f32.gmra.mxu0 %v396
      %v1069 = vpop.f32.mrf.mxu0
      %v1070 = vadd.f32 %v984, %v1069
      %v1071 = vpop.f32.mrf.mxu0
      %v1072 = vadd.f32 %v988, %v1071
      %1073 = vdwg.mxu0
      %1074 = vmatprep.subr.mxu0 0.0
      %1075 = vmatpush1.msra.mxu0 0.0
      %1076 = vmatprep.subr.mxu0 0.0
      %1077 = vmatpush1.msra.mxu0 0.0
      %1078 = vmatprep.subr.mxu0 0.0
      %1079 = vmatpush1.msra.mxu0 0.0
      %1080 = vmatprep.subr.mxu0 0.0
      %1081 = vmatpush1.msra.mxu0 0.0
      %1082 = vmatprep.subr.mxu0 0.0
      %1083 = vmatpush1.msra.mxu0 0.0
      %1084 = vmatprep.subr.mxu0 0.0
      %1085 = vmatpush1.msra.mxu0 0.0
      %1086 = vmatprep.subr.mxu0 0.0
      %1087 = vmatpush1.msra.mxu0 0.0
      %1088 = vmatprep.subr.mxu0 0.0
      %1089 = vmatpush1.msra.mxu0 0.0
      %1090 = vmatprep.subr.mxu0 0.0
      %1091 = vmatpush1.msra.mxu0 0.0
      %1092 = vmatprep.subr.mxu0 0.0
      %1093 = vmatpush1.msra.mxu0 0.0
      %1094 = vmatprep.subr.mxu0 %v995
      %1095 = vmatpush1.msra.mxu0 %v992
      %1096 = vmatprep.subr.mxu0 %v976
      %1097 = vmatpush1.msra.mxu0 %v975
      %1098 = vmatprep.subr.mxu0 %v974
      %1099 = vmatpush1.msra.mxu0 %v973
      %1100 = vmatprep.subr.mxu0 %v972
      %1101 = vmatpush1.msra.mxu0 %v971
      %1102 = vmatprep.subr.mxu0 %v970
      %1103 = vmatpush1.msra.mxu0 %v969
      %1104 = vmatprep.subr.mxu0 %v968
      %1105 = vmatpush1.msra.mxu0 %v967
      %1106 = vmatprep.subr.mxu0 0.0
      %1107 = vmatpush2.msra.mxu0 0.0
      %1108 = vmatprep.subr.mxu0 0.0
      %1109 = vmatpush2.msra.mxu0 0.0
      %1110 = vmatprep.subr.mxu0 0.0
      %1111 = vmatpush2.msra.mxu0 0.0
      %1112 = vmatprep.subr.mxu0 0.0
      %1113 = vmatpush2.msra.mxu0 0.0
      %1114 = vmatprep.subr.mxu0 0.0
      %1115 = vmatpush2.msra.mxu0 0.0
      %1116 = vmatprep.subr.mxu0 0.0
      %1117 = vmatpush2.msra.mxu0 0.0
      %1118 = vmatprep.subr.mxu0 0.0
      %1119 = vmatpush2.msra.mxu0 0.0
      %1120 = vmatprep.subr.mxu0 0.0
      %1121 = vmatpush2.msra.mxu0 0.0
      %1122 = vmatprep.subr.mxu0 0.0
      %1123 = vmatpush2.msra.mxu0 0.0
      %1124 = vmatprep.subr.mxu0 0.0
      %1125 = vmatpush2.msra.mxu0 0.0
      %1126 = vmatprep.subr.mxu0 0.0
      %1127 = vmatpush2.msra.mxu0 0.0
      %1128 = vmatprep.subr.mxu0 0.0
      %1129 = vmatpush2.msra.mxu0 0.0
      %1130 = vmatprep.subr.mxu0 0.0
      %1131 = vmatpush2.msra.mxu0 0.0
      %1132 = vmatprep.subr.mxu0 0.0
      %1133 = vmatpush2.msra.mxu0 0.0
      %1134 = vmatprep.subr.mxu0 0.0
      %1135 = vmatpush2.msra.mxu0 0.0
      %1136 = vmatprep.subr.mxu0 0.0
      %1137 = vmatpush2.msra.mxu0 0.0
      %1138 = vmatprep.mubr.f32.mxu0 0.0
      %1139 = vmatmul.mubr.f32.gmra.mxu0 %v489
      %v1140 = vpop.f32.mrf.mxu0
      %v1141 = vadd.f32 %v1064, %v1140
      %v1142 = vpop.f32.mrf.mxu0
      %v1143 = vadd.f32 %v1066, %v1142
      %1144 = vmatprep.mubr.f32.mxu0 0.0
      %1145 = vmatmul.mubr.f32.gmra.mxu0 %v492
      %v1146 = vpop.f32.mrf.mxu0
      %v1147 = vadd.f32 %v1070, %v1146
      %v1148 = vpop.f32.mrf.mxu0
      %v1149 = vadd.f32 %v1072, %v1148
      %1150 = vdwg.mxu0
      %v1151 = vmax.f32 %v645, %v893
      %v1152 = vmax.f32 %v647, %v895
      %v1153 = vmax.f32 %v651, %v899
      %v1154 = vmax.f32 %v653, %v901
      %v1155 = vmax.f32 %v1151, %v1141
      %v1156 = vmax.f32 %v1152, %v1143
      %v1157 = vmax.f32 %v1153, %v1147
      %v1158 = vmax.f32 %v1154, %v1149
      %v1159 = vld [vmem:[%s7] sm:$0xff]
      %v1160 = vld [vmem:[%s7 + $0x8] sm:$0xff]
      %v1161 = vld [vmem:[%s7 + $0x10] sm:$0xff]
      %v1162 = vld [vmem:[%s7 + $0x18] sm:$0xff]
      %v1163 = vld [vmem:[%s7 + $0x20] sm:$0xff]
      %v1164 = vld [vmem:[%s7 + $0x28] sm:$0xff]
      %v1165 = vld [vmem:[%s7 + $0x30] sm:$0xff]
      %v1166 = vld [vmem:[%s7 + $0x38] sm:$0xff]
      %v1167 = vld [vmem:[%s7 + $0x40] sm:$0xff]
      %v1168 = vld [vmem:[%s7 + $0x48] sm:$0xff]
      %v1169 = vld [vmem:[%s7 + $0x50] sm:$0xff]
      %v1170 = vld [vmem:[%s7 + $0x58] sm:$0xff]
      %v1171 = vld [vmem:[%s7 + $0x60] sm:$0xff]
      %v1172 = vld [vmem:[%s7 + $0x68] sm:$0xff]
      %v1173 = vld [vmem:[%s7 + $0x70] sm:$0xff]
      %v1174 = vld [vmem:[%s7 + $0x78] sm:$0xff]
      %v1175 = vld [vmem:[%s7 + $0x80] sm:$0xff]
      %v1176 = vld [vmem:[%s7 + $0x88] sm:$0xff]
      %v1177 = vld [vmem:[%s7 + $0x90] sm:$0x3f]
      %v1178 = vld [vmem:[%s8] sm:$0x1]
      %v1180 = vlaneseq
      %v1181 = vshrl.u32 %v1180, 7
      %v1182 = vsub.s32 0, %v1181
      %v1183 = vrot.slane %v1178, %v1182
      %vm1185 = vcmask 179200
      %v1187 = vsel %vm1185, %v1156, 0
      %v1190 = vsel %vm1185, %v1158, 0
      %vm1192 = vcmask 1045504
      %v1194 = vsel %vm1192, %v1177, 0
      %1196 = vmatprep.subr.mxu0 0.0
      %1197 = vmatpush1.msra.mxu0 %v1174
      %1198 = vmatprep.subr.mxu0 0.0
      %1199 = vmatpush1.msra.mxu0 %v1173
      %1200 = vmatprep.subr.mxu0 0.0
      %1201 = vmatpush1.msra.mxu0 %v1172
      %1202 = vmatprep.subr.mxu0 0.0
      %1203 = vmatpush1.msra.mxu0 %v1171
      %1204 = vmatprep.subr.mxu0 0.0
      %1205 = vmatpush1.msra.mxu0 %v1170
      %1206 = vmatprep.subr.mxu0 0.0
      %1207 = vmatpush1.msra.mxu0 %v1169
      %1208 = vmatprep.subr.mxu0 0.0
      %1209 = vmatpush1.msra.mxu0 %v1168
      %1210 = vmatprep.subr.mxu0 0.0
      %1211 = vmatpush1.msra.mxu0 %v1167
      %1212 = vmatprep.subr.mxu0 0.0
      %1213 = vmatpush1.msra.mxu0 %v1166
      %1214 = vmatprep.subr.mxu0 0.0
      %1215 = vmatpush1.msra.mxu0 %v1165
      %1216 = vmatprep.subr.mxu0 0.0
      %1217 = vmatpush1.msra.mxu0 %v1164
      %1218 = vmatprep.subr.mxu0 0.0
      %1219 = vmatpush1.msra.mxu0 %v1163
      %1220 = vmatprep.subr.mxu0 0.0
      %1221 = vmatpush1.msra.mxu0 %v1162
      %1222 = vmatprep.subr.mxu0 0.0
      %1223 = vmatpush1.msra.mxu0 %v1161
      %1224 = vmatprep.subr.mxu0 0.0
      %1225 = vmatpush1.msra.mxu0 %v1160
      %1226 = vmatprep.subr.mxu0 0.0
      %1227 = vmatpush1.msra.mxu0 %v1159
      %1228 = vmatprep.subr.mxu0 0.0
      %1229 = vmatpush2.msra.mxu0 0.0
      %1230 = vmatprep.subr.mxu0 0.0
      %1231 = vmatpush2.msra.mxu0 0.0
      %1232 = vmatprep.subr.mxu0 0.0
      %1233 = vmatpush2.msra.mxu0 0.0
      %1234 = vmatprep.subr.mxu0 0.0
      %1235 = vmatpush2.msra.mxu0 0.0
      %1236 = vmatprep.subr.mxu0 0.0
      %1237 = vmatpush2.msra.mxu0 0.0
      %1238 = vmatprep.subr.mxu0 0.0
      %1239 = vmatpush2.msra.mxu0 0.0
      %1240 = vmatprep.subr.mxu0 0.0
      %1241 = vmatpush2.msra.mxu0 0.0
      %1242 = vmatprep.subr.mxu0 0.0
      %1243 = vmatpush2.msra.mxu0 0.0
      %1244 = vmatprep.subr.mxu0 0.0
      %1245 = vmatpush2.msra.mxu0 0.0
      %1246 = vmatprep.subr.mxu0 0.0
      %1247 = vmatpush2.msra.mxu0 0.0
      %1248 = vmatprep.subr.mxu0 0.0
      %1249 = vmatpush2.msra.mxu0 0.0
      %1250 = vmatprep.subr.mxu0 0.0
      %1251 = vmatpush2.msra.mxu0 0.0
      %1252 = vmatprep.subr.mxu0 0.0
      %1253 = vmatpush2.msra.mxu0 0.0
      %1254 = vmatprep.subr.mxu0 0.0
      %1255 = vmatpush2.msra.mxu0 %v1194
      %1256 = vmatprep.subr.mxu0 0.0
      %1257 = vmatpush2.msra.mxu0 %v1176
      %1258 = vmatprep.subr.mxu0 0.0
      %1259 = vmatpush2.msra.mxu0 %v1175
      %1260 = vmatprep.mubr.f32.mxu0 %v1187
      %1261 = vmatmul.mubr.f32.gmra.mxu0 %v1155
      %v1262 = vpop.f32.mrf.mxu0
      %v1263 = vadd.f32 %v1183, %v1262
      %v1264 = vpop.f32.mrf.mxu0
      %1265 = vmatprep.mubr.f32.mxu0 %v1190
      %1266 = vmatmul.mubr.f32.gmra.mxu0 %v1157
      %v1267 = vpop.f32.mrf.mxu0
      %v1268 = vadd.f32 %v1183, %v1267
      %v1269 = vpop.f32.mrf.mxu0
      %1270 = vdwg.mxu0
      %v1271 = vmax.f32 %v1263, 0.0
      %v1272 = vmax.f32 %v1268, 0.0
      %v1273 = vld [vmem:[%s9] sm:$0xff]
      %v1274 = vld [vmem:[%s9 + $0x8] sm:$0xff]
      %v1275 = vld [vmem:[%s10] sm:$0x1]
      %v1277 = vlaneseq
      %v1278 = vshrl.u32 %v1277, 7
      %v1279 = vsub.s32 0, %v1278
      %v1280 = vrot.slane %v1275, %v1279
      %vm1282 = vcmask 130048
      %v1284 = vsel %vm1282, %v1271, 0
      %v1287 = vsel %vm1282, %v1272, 0
      %1289 = vmatprep.subr.mxu0 0.0
      %1290 = vmatpush1.msra.mxu0 0.0
      %1291 = vmatprep.subr.mxu0 0.0
      %1292 = vmatpush1.msra.mxu0 0.0
      %1293 = vmatprep.subr.mxu0 0.0
      %1294 = vmatpush1.msra.mxu0 0.0
      %1295 = vmatprep.subr.mxu0 0.0
      %1296 = vmatpush1.msra.mxu0 0.0
      %1297 = vmatprep.subr.mxu0 0.0
      %1298 = vmatpush1.msra.mxu0 0.0
      %1299 = vmatprep.subr.mxu0 0.0
      %1300 = vmatpush1.msra.mxu0 0.0
      %1301 = vmatprep.subr.mxu0 0.0
      %1302 = vmatpush1.msra.mxu0 0.0
      %1303 = vmatprep.subr.mxu0 0.0
      %1304 = vmatpush1.msra.mxu0 0.0
      %1305 = vmatprep.subr.mxu0 0.0
      %1306 = vmatpush1.msra.mxu0 0.0
      %1307 = vmatprep.subr.mxu0 0.0
      %1308 = vmatpush1.msra.mxu0 0.0
      %1309 = vmatprep.subr.mxu0 0.0
      %1310 = vmatpush1.msra.mxu0 0.0
      %1311 = vmatprep.subr.mxu0 0.0
      %1312 = vmatpush1.msra.mxu0 0.0
      %1313 = vmatprep.subr.mxu0 0.0
      %1314 = vmatpush1.msra.mxu0 0.0
      %1315 = vmatprep.subr.mxu0 0.0
      %1316 = vmatpush1.msra.mxu0 0.0
      %1317 = vmatprep.subr.mxu0 0.0
      %1318 = vmatpush1.msra.mxu0 %v1274
      %1319 = vmatprep.subr.mxu0 0.0
      %1320 = vmatpush1.msra.mxu0 %v1273
      %1321 = vmatprep.subr.mxu0 0.0
      %1322 = vmatpush2.msra.mxu0 0.0
      %1323 = vmatprep.subr.mxu0 0.0
      %1324 = vmatpush2.msra.mxu0 0.0
      %1325 = vmatprep.subr.mxu0 0.0
      %1326 = vmatpush2.msra.mxu0 0.0
      %1327 = vmatprep.subr.mxu0 0.0
      %1328 = vmatpush2.msra.mxu0 0.0
      %1329 = vmatprep.subr.mxu0 0.0
      %1330 = vmatpush2.msra.mxu0 0.0
      %1331 = vmatprep.subr.mxu0 0.0
      %1332 = vmatpush2.msra.mxu0 0.0
      %1333 = vmatprep.subr.mxu0 0.0
      %1334 = vmatpush2.msra.mxu0 0.0
      %1335 = vmatprep.subr.mxu0 0.0
      %1336 = vmatpush2.msra.mxu0 0.0
      %1337 = vmatprep.subr.mxu0 0.0
      %1338 = vmatpush2.msra.mxu0 0.0
      %1339 = vmatprep.subr.mxu0 0.0
      %1340 = vmatpush2.msra.mxu0 0.0
      %1341 = vmatprep.subr.mxu0 0.0
      %1342 = vmatpush2.msra.mxu0 0.0
      %1343 = vmatprep.subr.mxu0 0.0
      %1344 = vmatpush2.msra.mxu0 0.0
      %1345 = vmatprep.subr.mxu0 0.0
      %1346 = vmatpush2.msra.mxu0 0.0
      %1347 = vmatprep.subr.mxu0 0.0
      %1348 = vmatpush2.msra.mxu0 0.0
      %1349 = vmatprep.subr.mxu0 0.0
      %1350 = vmatpush2.msra.mxu0 0.0
      %1351 = vmatprep.subr.mxu0 0.0
      %1352 = vmatpush2.msra.mxu0 0.0
      %1353 = vmatprep.mubr.f32.mxu0 0.0
      %1354 = vmatmul.mubr.f32.gmra.mxu0 %v1284
      %v1355 = vpop.f32.mrf.mxu0
      %v1356 = vadd.f32 %v1280, %v1355
      %v1357 = vpop.f32.mrf.mxu0
      %1358 = vmatprep.mubr.f32.mxu0 0.0
      %1359 = vmatmul.mubr.f32.gmra.mxu0 %v1287
      %v1360 = vpop.f32.mrf.mxu0
      %v1361 = vadd.f32 %v1280, %v1360
      %v1362 = vpop.f32.mrf.mxu0
      %1363 = vdwg.mxu0
      %vm1364 = vcmask 39936
      %1365 = vst.msk [vmem:[%s391] sm:$0xff] %vm1364, %v1356
      %1366 = vst.msk [vmem:[%s391 + $0x8] sm:$0xff] %vm1364, %v1361
      %s1367 = smul.u32 2, %s22
      %p1368 = scmp.lt.s32.totalorder %s1367, 3
      %s1369 = scalar_select %p1368, %s1367, 3
      %s1370 = smul.addr %s1369, 8
      %s1371 = scalar_lea.vmem %s11, %s1370
      // Predicated region
      $region65: #{tpu_custom_call.1} parent=63 // pred_check
        %p1372 = pneg %p276
      $region66: #{tpu_custom_call.1} parent=63 // pred_check_branch
        %1374 = sbr.rel (%p1372) target = $region68
      $region67: #{tpu_custom_call.1} parent=63 // pred_region
        %s1375 = smul.u32 2, %s22
      $region68: #{tpu_custom_call.1} parent=63 // pred_fallthru
        _
    $region64: #{tpu_custom_call.1} parent=5 // pred_fallthru
      _
    %p1376 = scmp.le.s32.totalorder 2, %s17
    // Predicated region
    $region69: #{tpu_custom_call.1} parent=5 // pred_check
      %p1377 = pneg %p1376
    $region70: #{tpu_custom_call.1} parent=5 // pred_check_branch
      %1379 = sbr.rel (%p1377) target = $region72
    $region71: #{tpu_custom_call.1} parent=5 // pred_region
      %s1380 = ssub.s32 %s17, 2
      // Predicated region
      $region73: #{tpu_custom_call.1} parent=71 // pred_check
        %p1381 = pneg %p282
      $region74: #{tpu_custom_call.1} parent=71 // pred_check_branch
        %1383 = sbr.rel (%p1381) target = $region76
      $region75: #{tpu_custom_call.1} parent=71 // pred_region
        %s1384 = smul.u32 2, %s23
        %p1385 = scmp.lt.s32.totalorder %s1384, 3
        %s1386 = scalar_select %p1385, %s1384, 3
        %s1387 = smul.addr %s1386, 8
        %s1388 = scalar_lea.vmem %s11, %s1387
      $region76: #{tpu_custom_call.1} parent=71 // pred_fallthru
        _
    $region72: #{tpu_custom_call.1} parent=5 // pred_fallthru
      _
  $region6: #{tpu_custom_call.1} parent=0 // loop_footer
    %s21 = sadd.s32 1, %s17
  $region7: #{tpu_custom_call.1} parent=0 // loop_footer_branch
    %16 = sbr.rel target = $region3
  $region8: #{tpu_custom_call.1} parent=0 // loop_exit
    _

</llo_original>
